<compile_context>
chip_gen: v5e
topology: v5e:2x2
jax: 0.10.0
libtpu: 0.0.40
codegen_flags: <defaults>
</compile_context>

<pallas_src>
import numpy as np
import jax
import jax.numpy as jnp
from jax import lax
from jax.experimental import pallas as pl
from jax.experimental.pallas import tpu as pltpu

INPUT_SIZE = 1
HIDDEN_SIZE = 50
NUM_LAYERS = 2
OUTPUT_SIZE = 1


def _lstm_fc_kernel(xp1_ref, whh1_ref, wih2_ref, whh2_ref, b2_ref,
                    wfc_ref, bfc_ref, out_ref):
    # xp1: precomputed layer-1 input projection x @ Wih1 + b1, time-major (T, B, 4H)
    T, B, G = xp1_ref.shape
    H = G // 4

    # Hoist the (tiny) weights into values once.
    whh1 = whh1_ref[...]             # (H, 4H)
    wih2 = wih2_ref[...]             # (H, 4H)
    whh2 = whh2_ref[...]             # (H, 4H)
    b2 = b2_ref[...]                 # (1, 4H)

    def act(z, c):
        # Packed gate order (i, f, o, g): one contiguous sigmoid + one tanh.
        sig = jax.nn.sigmoid(z[:, :3 * H])      # (B, 3H)
        g_g = jnp.tanh(z[:, 3 * H:])            # (B, H)
        i_g = sig[:, 0:H]
        f_g = sig[:, H:2 * H]
        o_g = sig[:, 2 * H:3 * H]
        c_new = f_g * c + i_g * g_g
        h_new = o_g * jnp.tanh(c_new)
        return h_new, c_new

    def step(t, carry):
        h1, c1, h2, c2 = carry
        # Layer 1: input projection hoisted out of the loop; only the recurrent
        # matmul stays on the serial critical path.
        z1 = xp1_ref[t] + jnp.dot(h1, whh1, preferred_element_type=jnp.float32)
        h1, c1 = act(z1, c1)
        # TODO(synk): inter-layer dropout (p=0.2) is identity in eval mode; omitted.
        z2 = (jnp.dot(h1, wih2, preferred_element_type=jnp.float32)
              + jnp.dot(h2, whh2, preferred_element_type=jnp.float32)
              + b2)
        h2, c2 = act(z2, c2)
        return (h1, c1, h2, c2)

    zeros = jnp.zeros((B, H), dtype=jnp.float32)   # h0 / c0 = zeros, as in forward()
    # T is static and small -> fully unroll for cross-step scheduling.
    h1, c1, h2, c2 = lax.fori_loop(0, T, step, (zeros, zeros, zeros, zeros),
                                   unroll=True)

    # fc(out[:, -1, :]) : (B, H) @ (H, O) + (1, O)
    out_ref[...] = (jnp.dot(h2, wfc_ref[...], preferred_element_type=jnp.float32)
                    + bfc_ref[...])


def lstm_model_forward(x, params):
    """x: (B, T, I) float32, batch_first like the PyTorch module. Returns (B, O)."""
    B, T, I = x.shape
    O = params["wfc"].shape[1]
    x = x.astype(jnp.float32)

    # Hoist the K=I=1 input projection out of the recurrence: one batched op
    # producing the time-major (T, B, 4H) layer-1 pre-activation (b1 folded in).
    xp1 = jnp.einsum("bti,ig->tbg", x, params["wih1"]) + params["b1"]

    vmem_full = lambda: pl.BlockSpec(memory_space=pltpu.MemorySpace.VMEM)

    return pl.pallas_call(
        _lstm_fc_kernel,
        out_shape=jax.ShapeDtypeStruct((B, O), jnp.float32),
        in_specs=[vmem_full() for _ in range(7)],
        out_specs=vmem_full(),
    )(xp1,
      params["whh1"], params["wih2"], params["whh2"], params["b2"],
      params["wfc"], params["bfc"])


def init_params(key, input_size=INPUT_SIZE, hidden_size=HIDDEN_SIZE,
                output_size=OUTPUT_SIZE):
    """Deterministic synthetic init matching PyTorch shapes (uniform +-1/sqrt(H)).

    Weights are stored pre-packed for the kernel: per layer, W_ih as
    (in_dim, 4H) and W_hh as (H, 4H), gate column order (i, f, o, g); biases
    are b_ih + b_hh summed, shape (1, 4H). fc weight is stored transposed (H, O).
    """
    H = hidden_size
    bound = 1.0 / np.sqrt(H)
    ks = jax.random.split(key, 12)
    u = lambda k, shape: jax.random.uniform(k, shape, jnp.float32, -bound, bound)

    wih1 = u(ks[0], (input_size, 4 * H))
    whh1 = u(ks[1], (H, 4 * H))
    b1 = u(ks[2], (1, 4 * H)) + u(ks[3], (1, 4 * H))    # b_ih + b_hh
    wih2 = u(ks[4], (H, 4 * H))
    whh2 = u(ks[5], (H, 4 * H))
    b2 = u(ks[6], (1, 4 * H)) + u(ks[7], (1, 4 * H))
    wfc = u(ks[8], (H, output_size))
    bfc = u(ks[9], (1, output_size))
    return dict(wih1=wih1, whh1=whh1, b1=b1,
                wih2=wih2, whh2=whh2, b2=b2,
                wfc=wfc, bfc=bfc)


def reference_forward(x, p):
    """Pure-JAX reference of the same forward (packed (i,f,o,g) gate layout)."""
    B, T, I = x.shape
    H = p["whh1"].shape[0]

    def cell(x_t, h, c, wih, whh, b):
        z = x_t @ wih + h @ whh + b          # (B, 4H), gates packed (i, f, o, g)
        i_g = jax.nn.sigmoid(z[:, 0:H])
        f_g = jax.nn.sigmoid(z[:, H:2 * H])
        o_g = jax.nn.sigmoid(z[:, 2 * H:3 * H])
        g_g = jnp.tanh(z[:, 3 * H:4 * H])
        c_new = f_g * c + i_g * g_g
        return o_g * jnp.tanh(c_new), c_new

    h1 = c1 = h2 = c2 = jnp.zeros((B, H), jnp.float32)
    for t in range(T):
        h1, c1 = cell(x[:, t, :], h1, c1, p["wih1"], p["whh1"], p["b1"])
        h2, c2 = cell(h1, h2, c2, p["wih2"], p["whh2"], p["b2"])
    return h2 @ p["wfc"] + p["bfc"]


if __name__ == "__main__":
    key = jax.random.PRNGKey(0)
    k_param, k_x = jax.random.split(key)

    B, T = 2, 8
    params = init_params(k_param)
    x = jax.random.normal(k_x, (B, T, INPUT_SIZE), dtype=jnp.float32)

    out = lstm_model_forward(x, params)
    out = jax.block_until_ready(out)

    ref = reference_forward(x, params)
    assert out.shape == (B, OUTPUT_SIZE)
    np.testing.assert_allclose(np.asarray(out), np.asarray(ref), rtol=1e-4, atol=1e-4)

    print("KERNEL_OK")
</pallas_src>

<mosaic_0001>
module attributes {stable_mosaic.version = 11 : i64} {
  func.func @_lstm_fc_kernel(%arg0: memref<8x2x200xf32, #tpu.memory_space<vmem>>, %arg1: memref<50x200xf32, #tpu.memory_space<vmem>>, %arg2: memref<50x200xf32, #tpu.memory_space<vmem>>, %arg3: memref<50x200xf32, #tpu.memory_space<vmem>>, %arg4: memref<1x200xf32, #tpu.memory_space<vmem>>, %arg5: memref<50x1xf32, #tpu.memory_space<vmem>>, %arg6: memref<1x1xf32, #tpu.memory_space<vmem>>, %arg7: memref<2x1xf32, #tpu.memory_space<vmem>>) attributes {dimension_semantics = [], scalar_prefetch = 0 : i64, scratch_operands = 0 : i64, tpu.core_type = #tpu.core_type<tc>} {
    %c0 = arith.constant 0 : index
    %c0_0 = arith.constant 0 : index
    %0 = vector.load %arg1[%c0, %c0_0] : memref<50x200xf32, #tpu.memory_space<vmem>>, vector<50x200xf32>
    %c0_1 = arith.constant 0 : index
    %c0_2 = arith.constant 0 : index
    %1 = vector.load %arg2[%c0_1, %c0_2] : memref<50x200xf32, #tpu.memory_space<vmem>>, vector<50x200xf32>
    %c0_3 = arith.constant 0 : index
    %c0_4 = arith.constant 0 : index
    %2 = vector.load %arg3[%c0_3, %c0_4] : memref<50x200xf32, #tpu.memory_space<vmem>>, vector<50x200xf32>
    %c0_5 = arith.constant 0 : index
    %c0_6 = arith.constant 0 : index
    %3 = vector.load %arg4[%c0_5, %c0_6] : memref<1x200xf32, #tpu.memory_space<vmem>>, vector<1x200xf32>
    %cst = arith.constant 0.000000e+00 : f32
    %4 = vector.broadcast %cst : f32 to vector<2x50xf32>
    %c0_i32 = arith.constant 0 : i32
    %5 = arith.index_cast %c0_i32 : i32 to index
    %c0_7 = arith.constant 0 : index
    %c0_8 = arith.constant 0 : index
    %6 = vector.load %arg0[%5, %c0_7, %c0_8] : memref<8x2x200xf32, #tpu.memory_space<vmem>>, vector<1x2x200xf32>
    %7 = vector.shape_cast %6 : vector<1x2x200xf32> to vector<2x200xf32>
    %cst_9 = arith.constant dense<0.000000e+00> : vector<2x200xf32>
    %8 = tpu.matmul %4, %0, %cst_9 {dimension_numbers = #tpu.dot_dimension_numbers<[1], [0], [0], [1], [0, 0, 1, 1], [], []>} : vector<2x50xf32>, vector<50x200xf32>, vector<2x200xf32> -> vector<2x200xf32>
    %9 = arith.addf %7, %8 : vector<2x200xf32>
    %10 = vector.extract_strided_slice %9 {offsets = [0, 0], sizes = [2, 150], strides = [1, 1]} : vector<2x200xf32> to vector<2x150xf32>
    %11 = arith.negf %10 : vector<2x150xf32>
    %12 = math.exp %11 : vector<2x150xf32>
    %cst_10 = arith.constant 1.000000e+00 : f32
    %13 = vector.broadcast %cst_10 : f32 to vector<2x150xf32>
    %14 = arith.addf %13, %12 : vector<2x150xf32>
    %15 = arith.divf %13, %14 : vector<2x150xf32>
    %16 = vector.extract_strided_slice %9 {offsets = [0, 150], sizes = [2, 50], strides = [1, 1]} : vector<2x200xf32> to vector<2x50xf32>
    %17 = math.tanh %16 : vector<2x50xf32>
    %18 = vector.extract_strided_slice %15 {offsets = [0, 0], sizes = [2, 50], strides = [1, 1]} : vector<2x150xf32> to vector<2x50xf32>
    %19 = vector.extract_strided_slice %15 {offsets = [0, 50], sizes = [2, 50], strides = [1, 1]} : vector<2x150xf32> to vector<2x50xf32>
    %20 = vector.extract_strided_slice %15 {offsets = [0, 100], sizes = [2, 50], strides = [1, 1]} : vector<2x150xf32> to vector<2x50xf32>
    %21 = arith.mulf %19, %4 : vector<2x50xf32>
    %22 = arith.mulf %18, %17 : vector<2x50xf32>
    %23 = arith.addf %21, %22 : vector<2x50xf32>
    %24 = math.tanh %23 : vector<2x50xf32>
    %25 = arith.mulf %20, %24 : vector<2x50xf32>
    %cst_11 = arith.constant dense<0.000000e+00> : vector<2x200xf32>
    %26 = tpu.matmul %25, %1, %cst_11 {dimension_numbers = #tpu.dot_dimension_numbers<[1], [0], [0], [1], [0, 0, 1, 1], [], []>} : vector<2x50xf32>, vector<50x200xf32>, vector<2x200xf32> -> vector<2x200xf32>
    %cst_12 = arith.constant dense<0.000000e+00> : vector<2x200xf32>
    %27 = tpu.matmul %4, %2, %cst_12 {dimension_numbers = #tpu.dot_dimension_numbers<[1], [0], [0], [1], [0, 0, 1, 1], [], []>} : vector<2x50xf32>, vector<50x200xf32>, vector<2x200xf32> -> vector<2x200xf32>
    %28 = arith.addf %26, %27 : vector<2x200xf32>
    %29 = vector.broadcast %3 : vector<1x200xf32> to vector<2x200xf32>
    %30 = arith.addf %28, %29 : vector<2x200xf32>
    %31 = vector.extract_strided_slice %30 {offsets = [0, 0], sizes = [2, 150], strides = [1, 1]} : vector<2x200xf32> to vector<2x150xf32>
    %32 = arith.negf %31 : vector<2x150xf32>
    %33 = math.exp %32 : vector<2x150xf32>
    %cst_13 = arith.constant 1.000000e+00 : f32
    %34 = vector.broadcast %cst_13 : f32 to vector<2x150xf32>
    %35 = arith.addf %34, %33 : vector<2x150xf32>
    %36 = arith.divf %34, %35 : vector<2x150xf32>
    %37 = vector.extract_strided_slice %30 {offsets = [0, 150], sizes = [2, 50], strides = [1, 1]} : vector<2x200xf32> to vector<2x50xf32>
    %38 = math.tanh %37 : vector<2x50xf32>
    %39 = vector.extract_strided_slice %36 {offsets = [0, 0], sizes = [2, 50], strides = [1, 1]} : vector<2x150xf32> to vector<2x50xf32>
    %40 = vector.extract_strided_slice %36 {offsets = [0, 50], sizes = [2, 50], strides = [1, 1]} : vector<2x150xf32> to vector<2x50xf32>
    %41 = vector.extract_strided_slice %36 {offsets = [0, 100], sizes = [2, 50], strides = [1, 1]} : vector<2x150xf32> to vector<2x50xf32>
    %42 = arith.mulf %40, %4 : vector<2x50xf32>
    %43 = arith.mulf %39, %38 : vector<2x50xf32>
    %44 = arith.addf %42, %43 : vector<2x50xf32>
    %45 = math.tanh %44 : vector<2x50xf32>
    %46 = arith.mulf %41, %45 : vector<2x50xf32>
    %c1_i32 = arith.constant 1 : i32
    %47 = arith.index_cast %c1_i32 : i32 to index
    %c0_14 = arith.constant 0 : index
    %c0_15 = arith.constant 0 : index
    %48 = vector.load %arg0[%47, %c0_14, %c0_15] : memref<8x2x200xf32, #tpu.memory_space<vmem>>, vector<1x2x200xf32>
    %49 = vector.shape_cast %48 : vector<1x2x200xf32> to vector<2x200xf32>
    %cst_16 = arith.constant dense<0.000000e+00> : vector<2x200xf32>
    %50 = tpu.matmul %25, %0, %cst_16 {dimension_numbers = #tpu.dot_dimension_numbers<[1], [0], [0], [1], [0, 0, 1, 1], [], []>} : vector<2x50xf32>, vector<50x200xf32>, vector<2x200xf32> -> vector<2x200xf32>
    %51 = arith.addf %49, %50 : vector<2x200xf32>
    %52 = vector.extract_strided_slice %51 {offsets = [0, 0], sizes = [2, 150], strides = [1, 1]} : vector<2x200xf32> to vector<2x150xf32>
    %53 = arith.negf %52 : vector<2x150xf32>
    %54 = math.exp %53 : vector<2x150xf32>
    %cst_17 = arith.constant 1.000000e+00 : f32
    %55 = vector.broadcast %cst_17 : f32 to vector<2x150xf32>
    %56 = arith.addf %55, %54 : vector<2x150xf32>
    %57 = arith.divf %55, %56 : vector<2x150xf32>
    %58 = vector.extract_strided_slice %51 {offsets = [0, 150], sizes = [2, 50], strides = [1, 1]} : vector<2x200xf32> to vector<2x50xf32>
    %59 = math.tanh %58 : vector<2x50xf32>
    %60 = vector.extract_strided_slice %57 {offsets = [0, 0], sizes = [2, 50], strides = [1, 1]} : vector<2x150xf32> to vector<2x50xf32>
    %61 = vector.extract_strided_slice %57 {offsets = [0, 50], sizes = [2, 50], strides = [1, 1]} : vector<2x150xf32> to vector<2x50xf32>
    %62 = vector.extract_strided_slice %57 {offsets = [0, 100], sizes = [2, 50], strides = [1, 1]} : vector<2x150xf32> to vector<2x50xf32>
    %63 = arith.mulf %61, %23 : vector<2x50xf32>
    %64 = arith.mulf %60, %59 : vector<2x50xf32>
    %65 = arith.addf %63, %64 : vector<2x50xf32>
    %66 = math.tanh %65 : vector<2x50xf32>
    %67 = arith.mulf %62, %66 : vector<2x50xf32>
    %cst_18 = arith.constant dense<0.000000e+00> : vector<2x200xf32>
    %68 = tpu.matmul %67, %1, %cst_18 {dimension_numbers = #tpu.dot_dimension_numbers<[1], [0], [0], [1], [0, 0, 1, 1], [], []>} : vector<2x50xf32>, vector<50x200xf32>, vector<2x200xf32> -> vector<2x200xf32>
    %cst_19 = arith.constant dense<0.000000e+00> : vector<2x200xf32>
    %69 = tpu.matmul %46, %2, %cst_19 {dimension_numbers = #tpu.dot_dimension_numbers<[1], [0], [0], [1], [0, 0, 1, 1], [], []>} : vector<2x50xf32>, vector<50x200xf32>, vector<2x200xf32> -> vector<2x200xf32>
    %70 = arith.addf %68, %69 : vector<2x200xf32>
    %71 = vector.broadcast %3 : vector<1x200xf32> to vector<2x200xf32>
    %72 = arith.addf %70, %71 : vector<2x200xf32>
    %73 = vector.extract_strided_slice %72 {offsets = [0, 0], sizes = [2, 150], strides = [1, 1]} : vector<2x200xf32> to vector<2x150xf32>
    %74 = arith.negf %73 : vector<2x150xf32>
    %75 = math.exp %74 : vector<2x150xf32>
    %cst_20 = arith.constant 1.000000e+00 : f32
    %76 = vector.broadcast %cst_20 : f32 to vector<2x150xf32>
    %77 = arith.addf %76, %75 : vector<2x150xf32>
    %78 = arith.divf %76, %77 : vector<2x150xf32>
    %79 = vector.extract_strided_slice %72 {offsets = [0, 150], sizes = [2, 50], strides = [1, 1]} : vector<2x200xf32> to vector<2x50xf32>
    %80 = math.tanh %79 : vector<2x50xf32>
    %81 = vector.extract_strided_slice %78 {offsets = [0, 0], sizes = [2, 50], strides = [1, 1]} : vector<2x150xf32> to vector<2x50xf32>
    %82 = vector.extract_strided_slice %78 {offsets = [0, 50], sizes = [2, 50], strides = [1, 1]} : vector<2x150xf32> to vector<2x50xf32>
    %83 = vector.extract_strided_slice %78 {offsets = [0, 100], sizes = [2, 50], strides = [1, 1]} : vector<2x150xf32> to vector<2x50xf32>
    %84 = arith.mulf %82, %44 : vector<2x50xf32>
    %85 = arith.mulf %81, %80 : vector<2x50xf32>
    %86 = arith.addf %84, %85 : vector<2x50xf32>
    %87 = math.tanh %86 : vector<2x50xf32>
    %88 = arith.mulf %83, %87 : vector<2x50xf32>
    %c2_i32 = arith.constant 2 : i32
    %89 = arith.index_cast %c2_i32 : i32 to index
    %c0_21 = arith.constant 0 : index
    %c0_22 = arith.constant 0 : index
    %90 = vector.load %arg0[%89, %c0_21, %c0_22] : memref<8x2x200xf32, #tpu.memory_space<vmem>>, vector<1x2x200xf32>
    %91 = vector.shape_cast %90 : vector<1x2x200xf32> to vector<2x200xf32>
    %cst_23 = arith.constant dense<0.000000e+00> : vector<2x200xf32>
    %92 = tpu.matmul %67, %0, %cst_23 {dimension_numbers = #tpu.dot_dimension_numbers<[1], [0], [0], [1], [0, 0, 1, 1], [], []>} : vector<2x50xf32>, vector<50x200xf32>, vector<2x200xf32> -> vector<2x200xf32>
    %93 = arith.addf %91, %92 : vector<2x200xf32>
    %94 = vector.extract_strided_slice %93 {offsets = [0, 0], sizes = [2, 150], strides = [1, 1]} : vector<2x200xf32> to vector<2x150xf32>
    %95 = arith.negf %94 : vector<2x150xf32>
    %96 = math.exp %95 : vector<2x150xf32>
    %cst_24 = arith.constant 1.000000e+00 : f32
    %97 = vector.broadcast %cst_24 : f32 to vector<2x150xf32>
    %98 = arith.addf %97, %96 : vector<2x150xf32>
    %99 = arith.divf %97, %98 : vector<2x150xf32>
    %100 = vector.extract_strided_slice %93 {offsets = [0, 150], sizes = [2, 50], strides = [1, 1]} : vector<2x200xf32> to vector<2x50xf32>
    %101 = math.tanh %100 : vector<2x50xf32>
    %102 = vector.extract_strided_slice %99 {offsets = [0, 0], sizes = [2, 50], strides = [1, 1]} : vector<2x150xf32> to vector<2x50xf32>
    %103 = vector.extract_strided_slice %99 {offsets = [0, 50], sizes = [2, 50], strides = [1, 1]} : vector<2x150xf32> to vector<2x50xf32>
    %104 = vector.extract_strided_slice %99 {offsets = [0, 100], sizes = [2, 50], strides = [1, 1]} : vector<2x150xf32> to vector<2x50xf32>
    %105 = arith.mulf %103, %65 : vector<2x50xf32>
    %106 = arith.mulf %102, %101 : vector<2x50xf32>
    %107 = arith.addf %105, %106 : vector<2x50xf32>
    %108 = math.tanh %107 : vector<2x50xf32>
    %109 = arith.mulf %104, %108 : vector<2x50xf32>
    %cst_25 = arith.constant dense<0.000000e+00> : vector<2x200xf32>
    %110 = tpu.matmul %109, %1, %cst_25 {dimension_numbers = #tpu.dot_dimension_numbers<[1], [0], [0], [1], [0, 0, 1, 1], [], []>} : vector<2x50xf32>, vector<50x200xf32>, vector<2x200xf32> -> vector<2x200xf32>
    %cst_26 = arith.constant dense<0.000000e+00> : vector<2x200xf32>
    %111 = tpu.matmul %88, %2, %cst_26 {dimension_numbers = #tpu.dot_dimension_numbers<[1], [0], [0], [1], [0, 0, 1, 1], [], []>} : vector<2x50xf32>, vector<50x200xf32>, vector<2x200xf32> -> vector<2x200xf32>
    %112 = arith.addf %110, %111 : vector<2x200xf32>
    %113 = vector.broadcast %3 : vector<1x200xf32> to vector<2x200xf32>
    %114 = arith.addf %112, %113 : vector<2x200xf32>
    %115 = vector.extract_strided_slice %114 {offsets = [0, 0], sizes = [2, 150], strides = [1, 1]} : vector<2x200xf32> to vector<2x150xf32>
    %116 = arith.negf %115 : vector<2x150xf32>
    %117 = math.exp %116 : vector<2x150xf32>
    %cst_27 = arith.constant 1.000000e+00 : f32
    %118 = vector.broadcast %cst_27 : f32 to vector<2x150xf32>
    %119 = arith.addf %118, %117 : vector<2x150xf32>
    %120 = arith.divf %118, %119 : vector<2x150xf32>
    %121 = vector.extract_strided_slice %114 {offsets = [0, 150], sizes = [2, 50], strides = [1, 1]} : vector<2x200xf32> to vector<2x50xf32>
    %122 = math.tanh %121 : vector<2x50xf32>
    %123 = vector.extract_strided_slice %120 {offsets = [0, 0], sizes = [2, 50], strides = [1, 1]} : vector<2x150xf32> to vector<2x50xf32>
    %124 = vector.extract_strided_slice %120 {offsets = [0, 50], sizes = [2, 50], strides = [1, 1]} : vector<2x150xf32> to vector<2x50xf32>
    %125 = vector.extract_strided_slice %120 {offsets = [0, 100], sizes = [2, 50], strides = [1, 1]} : vector<2x150xf32> to vector<2x50xf32>
    %126 = arith.mulf %124, %86 : vector<2x50xf32>
    %127 = arith.mulf %123, %122 : vector<2x50xf32>
    %128 = arith.addf %126, %127 : vector<2x50xf32>
    %129 = math.tanh %128 : vector<2x50xf32>
    %130 = arith.mulf %125, %129 : vector<2x50xf32>
    %c3_i32 = arith.constant 3 : i32
    %131 = arith.index_cast %c3_i32 : i32 to index
    %c0_28 = arith.constant 0 : index
    %c0_29 = arith.constant 0 : index
    %132 = vector.load %arg0[%131, %c0_28, %c0_29] : memref<8x2x200xf32, #tpu.memory_space<vmem>>, vector<1x2x200xf32>
    %133 = vector.shape_cast %132 : vector<1x2x200xf32> to vector<2x200xf32>
    %cst_30 = arith.constant dense<0.000000e+00> : vector<2x200xf32>
    %134 = tpu.matmul %109, %0, %cst_30 {dimension_numbers = #tpu.dot_dimension_numbers<[1], [0], [0], [1], [0, 0, 1, 1], [], []>} : vector<2x50xf32>, vector<50x200xf32>, vector<2x200xf32> -> vector<2x200xf32>
    %135 = arith.addf %133, %134 : vector<2x200xf32>
    %136 = vector.extract_strided_slice %135 {offsets = [0, 0], sizes = [2, 150], strides = [1, 1]} : vector<2x200xf32> to vector<2x150xf32>
    %137 = arith.negf %136 : vector<2x150xf32>
    %138 = math.exp %137 : vector<2x150xf32>
    %cst_31 = arith.constant 1.000000e+00 : f32
    %139 = vector.broadcast %cst_31 : f32 to vector<2x150xf32>
    %140 = arith.addf %139, %138 : vector<2x150xf32>
    %141 = arith.divf %139, %140 : vector<2x150xf32>
    %142 = vector.extract_strided_slice %135 {offsets = [0, 150], sizes = [2, 50], strides = [1, 1]} : vector<2x200xf32> to vector<2x50xf32>
    %143 = math.tanh %142 : vector<2x50xf32>
    %144 = vector.extract_strided_slice %141 {offsets = [0, 0], sizes = [2, 50], strides = [1, 1]} : vector<2x150xf32> to vector<2x50xf32>
    %145 = vector.extract_strided_slice %141 {offsets = [0, 50], sizes = [2, 50], strides = [1, 1]} : vector<2x150xf32> to vector<2x50xf32>
    %146 = vector.extract_strided_slice %141 {offsets = [0, 100], sizes = [2, 50], strides = [1, 1]} : vector<2x150xf32> to vector<2x50xf32>
    %147 = arith.mulf %145, %107 : vector<2x50xf32>
    %148 = arith.mulf %144, %143 : vector<2x50xf32>
    %149 = arith.addf %147, %148 : vector<2x50xf32>
    %150 = math.tanh %149 : vector<2x50xf32>
    %151 = arith.mulf %146, %150 : vector<2x50xf32>
    %cst_32 = arith.constant dense<0.000000e+00> : vector<2x200xf32>
    %152 = tpu.matmul %151, %1, %cst_32 {dimension_numbers = #tpu.dot_dimension_numbers<[1], [0], [0], [1], [0, 0, 1, 1], [], []>} : vector<2x50xf32>, vector<50x200xf32>, vector<2x200xf32> -> vector<2x200xf32>
    %cst_33 = arith.constant dense<0.000000e+00> : vector<2x200xf32>
    %153 = tpu.matmul %130, %2, %cst_33 {dimension_numbers = #tpu.dot_dimension_numbers<[1], [0], [0], [1], [0, 0, 1, 1], [], []>} : vector<2x50xf32>, vector<50x200xf32>, vector<2x200xf32> -> vector<2x200xf32>
    %154 = arith.addf %152, %153 : vector<2x200xf32>
    %155 = vector.broadcast %3 : vector<1x200xf32> to vector<2x200xf32>
    %156 = arith.addf %154, %155 : vector<2x200xf32>
    %157 = vector.extract_strided_slice %156 {offsets = [0, 0], sizes = [2, 150], strides = [1, 1]} : vector<2x200xf32> to vector<2x150xf32>
    %158 = arith.negf %157 : vector<2x150xf32>
    %159 = math.exp %158 : vector<2x150xf32>
    %cst_34 = arith.constant 1.000000e+00 : f32
    %160 = vector.broadcast %cst_34 : f32 to vector<2x150xf32>
    %161 = arith.addf %160, %159 : vector<2x150xf32>
    %162 = arith.divf %160, %161 : vector<2x150xf32>
    %163 = vector.extract_strided_slice %156 {offsets = [0, 150], sizes = [2, 50], strides = [1, 1]} : vector<2x200xf32> to vector<2x50xf32>
    %164 = math.tanh %163 : vector<2x50xf32>
    %165 = vector.extract_strided_slice %162 {offsets = [0, 0], sizes = [2, 50], strides = [1, 1]} : vector<2x150xf32> to vector<2x50xf32>
    %166 = vector.extract_strided_slice %162 {offsets = [0, 50], sizes = [2, 50], strides = [1, 1]} : vector<2x150xf32> to vector<2x50xf32>
    %167 = vector.extract_strided_slice %162 {offsets = [0, 100], sizes = [2, 50], strides = [1, 1]} : vector<2x150xf32> to vector<2x50xf32>
    %168 = arith.mulf %166, %128 : vector<2x50xf32>
    %169 = arith.mulf %165, %164 : vector<2x50xf32>
    %170 = arith.addf %168, %169 : vector<2x50xf32>
    %171 = math.tanh %170 : vector<2x50xf32>
    %172 = arith.mulf %167, %171 : vector<2x50xf32>
    %c4_i32 = arith.constant 4 : i32
    %173 = arith.index_cast %c4_i32 : i32 to index
    %c0_35 = arith.constant 0 : index
    %c0_36 = arith.constant 0 : index
    %174 = vector.load %arg0[%173, %c0_35, %c0_36] : memref<8x2x200xf32, #tpu.memory_space<vmem>>, vector<1x2x200xf32>
    %175 = vector.shape_cast %174 : vector<1x2x200xf32> to vector<2x200xf32>
    %cst_37 = arith.constant dense<0.000000e+00> : vector<2x200xf32>
    %176 = tpu.matmul %151, %0, %cst_37 {dimension_numbers = #tpu.dot_dimension_numbers<[1], [0], [0], [1], [0, 0, 1, 1], [], []>} : vector<2x50xf32>, vector<50x200xf32>, vector<2x200xf32> -> vector<2x200xf32>
    %177 = arith.addf %175, %176 : vector<2x200xf32>
    %178 = vector.extract_strided_slice %177 {offsets = [0, 0], sizes = [2, 150], strides = [1, 1]} : vector<2x200xf32> to vector<2x150xf32>
    %179 = arith.negf %178 : vector<2x150xf32>
    %180 = math.exp %179 : vector<2x150xf32>
    %cst_38 = arith.constant 1.000000e+00 : f32
    %181 = vector.broadcast %cst_38 : f32 to vector<2x150xf32>
    %182 = arith.addf %181, %180 : vector<2x150xf32>
    %183 = arith.divf %181, %182 : vector<2x150xf32>
    %184 = vector.extract_strided_slice %177 {offsets = [0, 150], sizes = [2, 50], strides = [1, 1]} : vector<2x200xf32> to vector<2x50xf32>
    %185 = math.tanh %184 : vector<2x50xf32>
    %186 = vector.extract_strided_slice %183 {offsets = [0, 0], sizes = [2, 50], strides = [1, 1]} : vector<2x150xf32> to vector<2x50xf32>
    %187 = vector.extract_strided_slice %183 {offsets = [0, 50], sizes = [2, 50], strides = [1, 1]} : vector<2x150xf32> to vector<2x50xf32>
    %188 = vector.extract_strided_slice %183 {offsets = [0, 100], sizes = [2, 50], strides = [1, 1]} : vector<2x150xf32> to vector<2x50xf32>
    %189 = arith.mulf %187, %149 : vector<2x50xf32>
    %190 = arith.mulf %186, %185 : vector<2x50xf32>
    %191 = arith.addf %189, %190 : vector<2x50xf32>
    %192 = math.tanh %191 : vector<2x50xf32>
    %193 = arith.mulf %188, %192 : vector<2x50xf32>
    %cst_39 = arith.constant dense<0.000000e+00> : vector<2x200xf32>
    %194 = tpu.matmul %193, %1, %cst_39 {dimension_numbers = #tpu.dot_dimension_numbers<[1], [0], [0], [1], [0, 0, 1, 1], [], []>} : vector<2x50xf32>, vector<50x200xf32>, vector<2x200xf32> -> vector<2x200xf32>
    %cst_40 = arith.constant dense<0.000000e+00> : vector<2x200xf32>
    %195 = tpu.matmul %172, %2, %cst_40 {dimension_numbers = #tpu.dot_dimension_numbers<[1], [0], [0], [1], [0, 0, 1, 1], [], []>} : vector<2x50xf32>, vector<50x200xf32>, vector<2x200xf32> -> vector<2x200xf32>
    %196 = arith.addf %194, %195 : vector<2x200xf32>
    %197 = vector.broadcast %3 : vector<1x200xf32> to vector<2x200xf32>
    %198 = arith.addf %196, %197 : vector<2x200xf32>
    %199 = vector.extract_strided_slice %198 {offsets = [0, 0], sizes = [2, 150], strides = [1, 1]} : vector<2x200xf32> to vector<2x150xf32>
    %200 = arith.negf %199 : vector<2x150xf32>
    %201 = math.exp %200 : vector<2x150xf32>
    %cst_41 = arith.constant 1.000000e+00 : f32
    %202 = vector.broadcast %cst_41 : f32 to vector<2x150xf32>
    %203 = arith.addf %202, %201 : vector<2x150xf32>
    %204 = arith.divf %202, %203 : vector<2x150xf32>
    %205 = vector.extract_strided_slice %198 {offsets = [0, 150], sizes = [2, 50], strides = [1, 1]} : vector<2x200xf32> to vector<2x50xf32>
    %206 = math.tanh %205 : vector<2x50xf32>
    %207 = vector.extract_strided_slice %204 {offsets = [0, 0], sizes = [2, 50], strides = [1, 1]} : vector<2x150xf32> to vector<2x50xf32>
    %208 = vector.extract_strided_slice %204 {offsets = [0, 50], sizes = [2, 50], strides = [1, 1]} : vector<2x150xf32> to vector<2x50xf32>
    %209 = vector.extract_strided_slice %204 {offsets = [0, 100], sizes = [2, 50], strides = [1, 1]} : vector<2x150xf32> to vector<2x50xf32>
    %210 = arith.mulf %208, %170 : vector<2x50xf32>
    %211 = arith.mulf %207, %206 : vector<2x50xf32>
    %212 = arith.addf %210, %211 : vector<2x50xf32>
    %213 = math.tanh %212 : vector<2x50xf32>
    %214 = arith.mulf %209, %213 : vector<2x50xf32>
    %c5_i32 = arith.constant 5 : i32
    %215 = arith.index_cast %c5_i32 : i32 to index
    %c0_42 = arith.constant 0 : index
    %c0_43 = arith.constant 0 : index
    %216 = vector.load %arg0[%215, %c0_42, %c0_43] : memref<8x2x200xf32, #tpu.memory_space<vmem>>, vector<1x2x200xf32>
    %217 = vector.shape_cast %216 : vector<1x2x200xf32> to vector<2x200xf32>
    %cst_44 = arith.constant dense<0.000000e+00> : vector<2x200xf32>
    %218 = tpu.matmul %193, %0, %cst_44 {dimension_numbers = #tpu.dot_dimension_numbers<[1], [0], [0], [1], [0, 0, 1, 1], [], []>} : vector<2x50xf32>, vector<50x200xf32>, vector<2x200xf32> -> vector<2x200xf32>
    %219 = arith.addf %217, %218 : vector<2x200xf32>
    %220 = vector.extract_strided_slice %219 {offsets = [0, 0], sizes = [2, 150], strides = [1, 1]} : vector<2x200xf32> to vector<2x150xf32>
    %221 = arith.negf %220 : vector<2x150xf32>
    %222 = math.exp %221 : vector<2x150xf32>
    %cst_45 = arith.constant 1.000000e+00 : f32
    %223 = vector.broadcast %cst_45 : f32 to vector<2x150xf32>
    %224 = arith.addf %223, %222 : vector<2x150xf32>
    %225 = arith.divf %223, %224 : vector<2x150xf32>
    %226 = vector.extract_strided_slice %219 {offsets = [0, 150], sizes = [2, 50], strides = [1, 1]} : vector<2x200xf32> to vector<2x50xf32>
    %227 = math.tanh %226 : vector<2x50xf32>
    %228 = vector.extract_strided_slice %225 {offsets = [0, 0], sizes = [2, 50], strides = [1, 1]} : vector<2x150xf32> to vector<2x50xf32>
    %229 = vector.extract_strided_slice %225 {offsets = [0, 50], sizes = [2, 50], strides = [1, 1]} : vector<2x150xf32> to vector<2x50xf32>
    %230 = vector.extract_strided_slice %225 {offsets = [0, 100], sizes = [2, 50], strides = [1, 1]} : vector<2x150xf32> to vector<2x50xf32>
    %231 = arith.mulf %229, %191 : vector<2x50xf32>
    %232 = arith.mulf %228, %227 : vector<2x50xf32>
    %233 = arith.addf %231, %232 : vector<2x50xf32>
    %234 = math.tanh %233 : vector<2x50xf32>
    %235 = arith.mulf %230, %234 : vector<2x50xf32>
    %cst_46 = arith.constant dense<0.000000e+00> : vector<2x200xf32>
    %236 = tpu.matmul %235, %1, %cst_46 {dimension_numbers = #tpu.dot_dimension_numbers<[1], [0], [0], [1], [0, 0, 1, 1], [], []>} : vector<2x50xf32>, vector<50x200xf32>, vector<2x200xf32> -> vector<2x200xf32>
    %cst_47 = arith.constant dense<0.000000e+00> : vector<2x200xf32>
    %237 = tpu.matmul %214, %2, %cst_47 {dimension_numbers = #tpu.dot_dimension_numbers<[1], [0], [0], [1], [0, 0, 1, 1], [], []>} : vector<2x50xf32>, vector<50x200xf32>, vector<2x200xf32> -> vector<2x200xf32>
    %238 = arith.addf %236, %237 : vector<2x200xf32>
    %239 = vector.broadcast %3 : vector<1x200xf32> to vector<2x200xf32>
    %240 = arith.addf %238, %239 : vector<2x200xf32>
    %241 = vector.extract_strided_slice %240 {offsets = [0, 0], sizes = [2, 150], strides = [1, 1]} : vector<2x200xf32> to vector<2x150xf32>
    %242 = arith.negf %241 : vector<2x150xf32>
    %243 = math.exp %242 : vector<2x150xf32>
    %cst_48 = arith.constant 1.000000e+00 : f32
    %244 = vector.broadcast %cst_48 : f32 to vector<2x150xf32>
    %245 = arith.addf %244, %243 : vector<2x150xf32>
    %246 = arith.divf %244, %245 : vector<2x150xf32>
    %247 = vector.extract_strided_slice %240 {offsets = [0, 150], sizes = [2, 50], strides = [1, 1]} : vector<2x200xf32> to vector<2x50xf32>
    %248 = math.tanh %247 : vector<2x50xf32>
    %249 = vector.extract_strided_slice %246 {offsets = [0, 0], sizes = [2, 50], strides = [1, 1]} : vector<2x150xf32> to vector<2x50xf32>
    %250 = vector.extract_strided_slice %246 {offsets = [0, 50], sizes = [2, 50], strides = [1, 1]} : vector<2x150xf32> to vector<2x50xf32>
    %251 = vector.extract_strided_slice %246 {offsets = [0, 100], sizes = [2, 50], strides = [1, 1]} : vector<2x150xf32> to vector<2x50xf32>
    %252 = arith.mulf %250, %212 : vector<2x50xf32>
    %253 = arith.mulf %249, %248 : vector<2x50xf32>
    %254 = arith.addf %252, %253 : vector<2x50xf32>
    %255 = math.tanh %254 : vector<2x50xf32>
    %256 = arith.mulf %251, %255 : vector<2x50xf32>
    %c6_i32 = arith.constant 6 : i32
    %257 = arith.index_cast %c6_i32 : i32 to index
    %c0_49 = arith.constant 0 : index
    %c0_50 = arith.constant 0 : index
    %258 = vector.load %arg0[%257, %c0_49, %c0_50] : memref<8x2x200xf32, #tpu.memory_space<vmem>>, vector<1x2x200xf32>
    %259 = vector.shape_cast %258 : vector<1x2x200xf32> to vector<2x200xf32>
    %cst_51 = arith.constant dense<0.000000e+00> : vector<2x200xf32>
    %260 = tpu.matmul %235, %0, %cst_51 {dimension_numbers = #tpu.dot_dimension_numbers<[1], [0], [0], [1], [0, 0, 1, 1], [], []>} : vector<2x50xf32>, vector<50x200xf32>, vector<2x200xf32> -> vector<2x200xf32>
    %261 = arith.addf %259, %260 : vector<2x200xf32>
    %262 = vector.extract_strided_slice %261 {offsets = [0, 0], sizes = [2, 150], strides = [1, 1]} : vector<2x200xf32> to vector<2x150xf32>
    %263 = arith.negf %262 : vector<2x150xf32>
    %264 = math.exp %263 : vector<2x150xf32>
    %cst_52 = arith.constant 1.000000e+00 : f32
    %265 = vector.broadcast %cst_52 : f32 to vector<2x150xf32>
    %266 = arith.addf %265, %264 : vector<2x150xf32>
    %267 = arith.divf %265, %266 : vector<2x150xf32>
    %268 = vector.extract_strided_slice %261 {offsets = [0, 150], sizes = [2, 50], strides = [1, 1]} : vector<2x200xf32> to vector<2x50xf32>
    %269 = math.tanh %268 : vector<2x50xf32>
    %270 = vector.extract_strided_slice %267 {offsets = [0, 0], sizes = [2, 50], strides = [1, 1]} : vector<2x150xf32> to vector<2x50xf32>
    %271 = vector.extract_strided_slice %267 {offsets = [0, 50], sizes = [2, 50], strides = [1, 1]} : vector<2x150xf32> to vector<2x50xf32>
    %272 = vector.extract_strided_slice %267 {offsets = [0, 100], sizes = [2, 50], strides = [1, 1]} : vector<2x150xf32> to vector<2x50xf32>
    %273 = arith.mulf %271, %233 : vector<2x50xf32>
    %274 = arith.mulf %270, %269 : vector<2x50xf32>
    %275 = arith.addf %273, %274 : vector<2x50xf32>
    %276 = math.tanh %275 : vector<2x50xf32>
    %277 = arith.mulf %272, %276 : vector<2x50xf32>
    %cst_53 = arith.constant dense<0.000000e+00> : vector<2x200xf32>
    %278 = tpu.matmul %277, %1, %cst_53 {dimension_numbers = #tpu.dot_dimension_numbers<[1], [0], [0], [1], [0, 0, 1, 1], [], []>} : vector<2x50xf32>, vector<50x200xf32>, vector<2x200xf32> -> vector<2x200xf32>
    %cst_54 = arith.constant dense<0.000000e+00> : vector<2x200xf32>
    %279 = tpu.matmul %256, %2, %cst_54 {dimension_numbers = #tpu.dot_dimension_numbers<[1], [0], [0], [1], [0, 0, 1, 1], [], []>} : vector<2x50xf32>, vector<50x200xf32>, vector<2x200xf32> -> vector<2x200xf32>
    %280 = arith.addf %278, %279 : vector<2x200xf32>
    %281 = vector.broadcast %3 : vector<1x200xf32> to vector<2x200xf32>
    %282 = arith.addf %280, %281 : vector<2x200xf32>
    %283 = vector.extract_strided_slice %282 {offsets = [0, 0], sizes = [2, 150], strides = [1, 1]} : vector<2x200xf32> to vector<2x150xf32>
    %284 = arith.negf %283 : vector<2x150xf32>
    %285 = math.exp %284 : vector<2x150xf32>
    %cst_55 = arith.constant 1.000000e+00 : f32
    %286 = vector.broadcast %cst_55 : f32 to vector<2x150xf32>
    %287 = arith.addf %286, %285 : vector<2x150xf32>
    %288 = arith.divf %286, %287 : vector<2x150xf32>
    %289 = vector.extract_strided_slice %282 {offsets = [0, 150], sizes = [2, 50], strides = [1, 1]} : vector<2x200xf32> to vector<2x50xf32>
    %290 = math.tanh %289 : vector<2x50xf32>
    %291 = vector.extract_strided_slice %288 {offsets = [0, 0], sizes = [2, 50], strides = [1, 1]} : vector<2x150xf32> to vector<2x50xf32>
    %292 = vector.extract_strided_slice %288 {offsets = [0, 50], sizes = [2, 50], strides = [1, 1]} : vector<2x150xf32> to vector<2x50xf32>
    %293 = vector.extract_strided_slice %288 {offsets = [0, 100], sizes = [2, 50], strides = [1, 1]} : vector<2x150xf32> to vector<2x50xf32>
    %294 = arith.mulf %292, %254 : vector<2x50xf32>
    %295 = arith.mulf %291, %290 : vector<2x50xf32>
    %296 = arith.addf %294, %295 : vector<2x50xf32>
    %297 = math.tanh %296 : vector<2x50xf32>
    %298 = arith.mulf %293, %297 : vector<2x50xf32>
    %c7_i32 = arith.constant 7 : i32
    %299 = arith.index_cast %c7_i32 : i32 to index
    %c0_56 = arith.constant 0 : index
    %c0_57 = arith.constant 0 : index
    %300 = vector.load %arg0[%299, %c0_56, %c0_57] : memref<8x2x200xf32, #tpu.memory_space<vmem>>, vector<1x2x200xf32>
    %301 = vector.shape_cast %300 : vector<1x2x200xf32> to vector<2x200xf32>
    %cst_58 = arith.constant dense<0.000000e+00> : vector<2x200xf32>
    %302 = tpu.matmul %277, %0, %cst_58 {dimension_numbers = #tpu.dot_dimension_numbers<[1], [0], [0], [1], [0, 0, 1, 1], [], []>} : vector<2x50xf32>, vector<50x200xf32>, vector<2x200xf32> -> vector<2x200xf32>
    %303 = arith.addf %301, %302 : vector<2x200xf32>
    %304 = vector.extract_strided_slice %303 {offsets = [0, 0], sizes = [2, 150], strides = [1, 1]} : vector<2x200xf32> to vector<2x150xf32>
    %305 = arith.negf %304 : vector<2x150xf32>
    %306 = math.exp %305 : vector<2x150xf32>
    %cst_59 = arith.constant 1.000000e+00 : f32
    %307 = vector.broadcast %cst_59 : f32 to vector<2x150xf32>
    %308 = arith.addf %307, %306 : vector<2x150xf32>
    %309 = arith.divf %307, %308 : vector<2x150xf32>
    %310 = vector.extract_strided_slice %303 {offsets = [0, 150], sizes = [2, 50], strides = [1, 1]} : vector<2x200xf32> to vector<2x50xf32>
    %311 = math.tanh %310 : vector<2x50xf32>
    %312 = vector.extract_strided_slice %309 {offsets = [0, 0], sizes = [2, 50], strides = [1, 1]} : vector<2x150xf32> to vector<2x50xf32>
    %313 = vector.extract_strided_slice %309 {offsets = [0, 50], sizes = [2, 50], strides = [1, 1]} : vector<2x150xf32> to vector<2x50xf32>
    %314 = vector.extract_strided_slice %309 {offsets = [0, 100], sizes = [2, 50], strides = [1, 1]} : vector<2x150xf32> to vector<2x50xf32>
    %315 = arith.mulf %313, %275 : vector<2x50xf32>
    %316 = arith.mulf %312, %311 : vector<2x50xf32>
    %317 = arith.addf %315, %316 : vector<2x50xf32>
    %318 = math.tanh %317 : vector<2x50xf32>
    %319 = arith.mulf %314, %318 : vector<2x50xf32>
    %cst_60 = arith.constant dense<0.000000e+00> : vector<2x200xf32>
    %320 = tpu.matmul %319, %1, %cst_60 {dimension_numbers = #tpu.dot_dimension_numbers<[1], [0], [0], [1], [0, 0, 1, 1], [], []>} : vector<2x50xf32>, vector<50x200xf32>, vector<2x200xf32> -> vector<2x200xf32>
    %cst_61 = arith.constant dense<0.000000e+00> : vector<2x200xf32>
    %321 = tpu.matmul %298, %2, %cst_61 {dimension_numbers = #tpu.dot_dimension_numbers<[1], [0], [0], [1], [0, 0, 1, 1], [], []>} : vector<2x50xf32>, vector<50x200xf32>, vector<2x200xf32> -> vector<2x200xf32>
    %322 = arith.addf %320, %321 : vector<2x200xf32>
    %323 = vector.broadcast %3 : vector<1x200xf32> to vector<2x200xf32>
    %324 = arith.addf %322, %323 : vector<2x200xf32>
    %325 = vector.extract_strided_slice %324 {offsets = [0, 0], sizes = [2, 150], strides = [1, 1]} : vector<2x200xf32> to vector<2x150xf32>
    %326 = arith.negf %325 : vector<2x150xf32>
    %327 = math.exp %326 : vector<2x150xf32>
    %cst_62 = arith.constant 1.000000e+00 : f32
    %328 = vector.broadcast %cst_62 : f32 to vector<2x150xf32>
    %329 = arith.addf %328, %327 : vector<2x150xf32>
    %330 = arith.divf %328, %329 : vector<2x150xf32>
    %331 = vector.extract_strided_slice %324 {offsets = [0, 150], sizes = [2, 50], strides = [1, 1]} : vector<2x200xf32> to vector<2x50xf32>
    %332 = math.tanh %331 : vector<2x50xf32>
    %333 = vector.extract_strided_slice %330 {offsets = [0, 0], sizes = [2, 50], strides = [1, 1]} : vector<2x150xf32> to vector<2x50xf32>
    %334 = vector.extract_strided_slice %330 {offsets = [0, 50], sizes = [2, 50], strides = [1, 1]} : vector<2x150xf32> to vector<2x50xf32>
    %335 = vector.extract_strided_slice %330 {offsets = [0, 100], sizes = [2, 50], strides = [1, 1]} : vector<2x150xf32> to vector<2x50xf32>
    %336 = arith.mulf %334, %296 : vector<2x50xf32>
    %337 = arith.mulf %333, %332 : vector<2x50xf32>
    %338 = arith.addf %336, %337 : vector<2x50xf32>
    %339 = math.tanh %338 : vector<2x50xf32>
    %340 = arith.mulf %335, %339 : vector<2x50xf32>
    %c8_i32 = arith.constant 8 : i32
    %c0_63 = arith.constant 0 : index
    %c0_64 = arith.constant 0 : index
    %341 = vector.load %arg5[%c0_63, %c0_64] : memref<50x1xf32, #tpu.memory_space<vmem>>, vector<50x1xf32>
    %cst_65 = arith.constant dense<0.000000e+00> : vector<2x1xf32>
    %342 = tpu.matmul %340, %341, %cst_65 {dimension_numbers = #tpu.dot_dimension_numbers<[1], [0], [0], [1], [0, 0, 1, 1], [], []>} : vector<2x50xf32>, vector<50x1xf32>, vector<2x1xf32> -> vector<2x1xf32>
    %c0_66 = arith.constant 0 : index
    %c0_67 = arith.constant 0 : index
    %343 = vector.load %arg6[%c0_66, %c0_67] : memref<1x1xf32, #tpu.memory_space<vmem>>, vector<1x1xf32>
    %344 = vector.broadcast %343 : vector<1x1xf32> to vector<2x1xf32>
    %345 = arith.addf %342, %344 : vector<2x1xf32>
    %c0_68 = arith.constant 0 : index
    %c0_69 = arith.constant 0 : index
    %346 = vector.load %arg7[%c0_68, %c0_69] : memref<2x1xf32, #tpu.memory_space<vmem>>, vector<2x1xf32>
    tpu.vector_store %arg7[%c0_68, %c0_69], %345 {strides = array<i32>} : memref<2x1xf32, #tpu.memory_space<vmem>>, vector<2x1xf32>,
    return
  }
}

</mosaic_0001>

<llo_original>
// kernel: tpu_custom_call.1
$region0: #{tpu_custom_call.1}
  #allocation0 [shape = 'u32[]', space=smem, size = 0x4, offset = 0x4, fixed_abs, tag = 'smem constant byte address 0x4 - core index']
  #allocation1 [shape = 'u32[72,128]{1,0:T(1,128)}', space=vmem, size = 0x9000, scoped, tag = 'internal scratch']
  #allocation2 [shape = 'f32[1,1]{1,0:T(1,128)S(1)}', space=vmem, size = 0x200, scoped, tag = 'scoped memory for tpu_custom_call.1']
  %s0 = inlined_call_operand.vmem [shape: f32[8,2,200], index: 0, kind: input, shape index: {}]
  %s1 = inlined_call_operand.hbm [shape: f32[50,200], index: 1, kind: input, shape index: {}]
  %s2 = inlined_call_operand.hbm [shape: f32[50,200], index: 2, kind: input, shape index: {}]
  %s3 = inlined_call_operand.hbm [shape: f32[50,200], index: 3, kind: input, shape index: {}]
  %s4 = inlined_call_operand.vmem [shape: f32[1,200], index: 4, kind: input, shape index: {}]
  %s5 = inlined_call_operand.vmem [shape: f32[50,1], index: 5, kind: input, shape index: {}]
  %s6 = inlined_call_operand.<no memory space> [shape: f32[1,1], index: 6, kind: input, shape index: {}]
  %s7 = inlined_call_operand.vmem [shape: f32[2,1], index: 7, kind: output, shape index: {}]
  %s8 = sld [smem:[#allocation0]]
  $region50: #{tpu_custom_call.1} parent=0
    _
  %s10 = ssub.s32 1, %s8
  %s11 = scalar_select 0, %s10, %s8
  %v12 = vstv %s6
  %13 = vst [vmem:[#allocation2] sm:$0x1] %v12
  $region1: #{tpu_custom_call.1} parent=0
    #allocation3 [shape = 'u8[57344]{0}', space=vmem, size = 0xe000, scoped, tag = 'input window, operand 1, single buffered']
    #allocation4 [shape = 's32[1]{0}', space=sflag, size = 0x4, scoped, tag = 'scoped memory for tpu_custom_call.1']
    #allocation5 [shape = 'u8[57344]{0}', space=vmem, size = 0xe000, scoped, tag = 'input window, operand 2, single buffered']
    #allocation6 [shape = 's32[1]{0}', space=sflag, size = 0x4, scoped, tag = 'scoped memory for tpu_custom_call.1']
    #allocation7 [shape = 'u8[57344]{0}', space=vmem, size = 0xe000, scoped, tag = 'input window, operand 3, single buffered']
    %14 = vsyncpa [#allocation4], 0
    %15 = vsyncpa [#allocation6], 0
    // Predicated region
    $region2: #{tpu_custom_call.1} parent=1 // pred_check
      _
    $region3: #{tpu_custom_call.1} parent=1 // pred_check_branch
      %17 = sbr.rel (0) target = $region5
    $region4: #{tpu_custom_call.1} parent=1 // pred_region
      _
    $region5: #{tpu_custom_call.1} parent=1 // pred_fallthru
      _
    // Predicated region
    $region6: #{tpu_custom_call.1} parent=1 // pred_check
      _
    $region7: #{tpu_custom_call.1} parent=1 // pred_check_branch
      %19 = sbr.rel (0) target = $region9
    $region8: #{tpu_custom_call.1} parent=1 // pred_region
      %21 = vsyncadd [#allocation4], 0
      %s22 = sshll.u32 %s1, 4
      %s23 = int_to_ptr.hbm [resolvable:$true] %s22
      %s24 = sshll.u32 [#allocation3], 4
      %s25 = int_to_ptr.vmem [resolvable:$true] %s24
      %30 = dma.hbm_to_vmem [thread:$0]  %s23, 1792, %s25, [#allocation4], 256, 256, 16
    $region9: #{tpu_custom_call.1} parent=1 // pred_fallthru
      _
    // Predicated region
    $region10: #{tpu_custom_call.1} parent=1 // pred_check
      _
    $region11: #{tpu_custom_call.1} parent=1 // pred_check_branch
      %32 = sbr.rel (0) target = $region13
    $region12: #{tpu_custom_call.1} parent=1 // pred_region
      %34 = vsyncadd [#allocation6], 0
      %s35 = sshll.u32 %s2, 4
      %s36 = int_to_ptr.hbm [resolvable:$true] %s35
      %s37 = sshll.u32 [#allocation5], 4
      %s38 = int_to_ptr.vmem [resolvable:$true] %s37
      %43 = dma.hbm_to_vmem [thread:$0]  %s36, 1792, %s38, [#allocation6], 256, 256, 16
    $region13: #{tpu_custom_call.1} parent=1 // pred_fallthru
      _
    // Predicated region
    $region14: #{tpu_custom_call.1} parent=1 // pred_check
      _
    $region15: #{tpu_custom_call.1} parent=1 // pred_check_branch
      %45 = sbr.rel (0) target = $region17
    $region16: #{tpu_custom_call.1} parent=1 // pred_region
      %47 = vsyncadd [#allocation6], 0
      %s48 = sshll.u32 %s3, 4
      %s49 = int_to_ptr.hbm [resolvable:$true] %s48
      %s50 = sshll.u32 [#allocation7], 4
      %s51 = int_to_ptr.vmem [resolvable:$true] %s50
      %56 = dma.hbm_to_vmem [thread:$0]  %s49, 1792, %s51, [#allocation6], 256, 256, 16
    $region17: #{tpu_custom_call.1} parent=1 // pred_fallthru
      _
    // Predicated region
    $region18: #{tpu_custom_call.1} parent=1 // pred_check
      _
    $region19: #{tpu_custom_call.1} parent=1 // pred_check_branch
      %58 = sbr.rel (0) target = $region21
    $region20: #{tpu_custom_call.1} parent=1 // pred_region
      _
    $region21: #{tpu_custom_call.1} parent=1 // pred_fallthru
      _
    // Predicated region
    $region22: #{tpu_custom_call.1} parent=1 // pred_check
      _
    $region23: #{tpu_custom_call.1} parent=1 // pred_check_branch
      %60 = sbr.rel (0) target = $region25
    $region24: #{tpu_custom_call.1} parent=1 // pred_region
      _
    $region25: #{tpu_custom_call.1} parent=1 // pred_fallthru
      _
    // Predicated region
    $region26: #{tpu_custom_call.1} parent=1 // pred_check
      _
    $region27: #{tpu_custom_call.1} parent=1 // pred_check_branch
      %62 = sbr.rel (0) target = $region29
    $region28: #{tpu_custom_call.1} parent=1 // pred_region
      _
    $region29: #{tpu_custom_call.1} parent=1 // pred_fallthru
      _
    // Predicated region
    $region30: #{tpu_custom_call.1} parent=1 // pred_check
      _
    $region31: #{tpu_custom_call.1} parent=1 // pred_check_branch
      %64 = sbr.rel (0) target = $region33
    $region32: #{tpu_custom_call.1} parent=1 // pred_region
      %66 = dma.done [#allocation4], 1792
    $region33: #{tpu_custom_call.1} parent=1 // pred_fallthru
      _
    // Predicated region
    $region34: #{tpu_custom_call.1} parent=1 // pred_check
      _
    $region35: #{tpu_custom_call.1} parent=1 // pred_check_branch
      %68 = sbr.rel (0) target = $region37
    $region36: #{tpu_custom_call.1} parent=1 // pred_region
      %70 = dma.done [#allocation6], 1792
    $region37: #{tpu_custom_call.1} parent=1 // pred_fallthru
      _
    // Predicated region
    $region38: #{tpu_custom_call.1} parent=1 // pred_check
      _
    $region39: #{tpu_custom_call.1} parent=1 // pred_check_branch
      %72 = sbr.rel (0) target = $region41
    $region40: #{tpu_custom_call.1} parent=1 // pred_region
      %74 = dma.done [#allocation6], 1792
    $region41: #{tpu_custom_call.1} parent=1 // pred_fallthru
      _
    %v75 = vld [vmem:[#allocation3] sm:$0xff]
    %v76 = vld [vmem:[#allocation3 + $0x8] sm:$0xff]
    %v77 = vld [vmem:[#allocation3 + $0x10] sm:$0xff]
    %v78 = vld [vmem:[#allocation3 + $0x18] sm:$0xff]
    %v79 = vld [vmem:[#allocation3 + $0x20] sm:$0xff]
    %v80 = vld [vmem:[#allocation3 + $0x28] sm:$0xff]
    %v81 = vld [vmem:[#allocation3 + $0x30] sm:$0xff]
    %v82 = vld [vmem:[#allocation3 + $0x38] sm:$0xff]
    %v83 = vld [vmem:[#allocation3 + $0x40] sm:$0xff]
    %v84 = vld [vmem:[#allocation3 + $0x48] sm:$0xff]
    %v85 = vld [vmem:[#allocation3 + $0x50] sm:$0xff]
    %v86 = vld [vmem:[#allocation3 + $0x58] sm:$0xff]
    %v87 = vld [vmem:[#allocation3 + $0x60] sm:$0x3]
    %v88 = vld [vmem:[#allocation3 + $0x68] sm:$0x3]
    %v89 = vld [vmem:[#allocation5] sm:$0xff]
    %v90 = vld [vmem:[#allocation5 + $0x8] sm:$0xff]
    %v91 = vld [vmem:[#allocation5 + $0x10] sm:$0xff]
    %v92 = vld [vmem:[#allocation5 + $0x18] sm:$0xff]
    %v93 = vld [vmem:[#allocation5 + $0x20] sm:$0xff]
    %v94 = vld [vmem:[#allocation5 + $0x28] sm:$0xff]
    %v95 = vld [vmem:[#allocation5 + $0x30] sm:$0xff]
    %v96 = vld [vmem:[#allocation5 + $0x38] sm:$0xff]
    %v97 = vld [vmem:[#allocation5 + $0x40] sm:$0xff]
    %v98 = vld [vmem:[#allocation5 + $0x48] sm:$0xff]
    %v99 = vld [vmem:[#allocation5 + $0x50] sm:$0xff]
    %v100 = vld [vmem:[#allocation5 + $0x58] sm:$0xff]
    %v101 = vld [vmem:[#allocation5 + $0x60] sm:$0x3]
    %v102 = vld [vmem:[#allocation5 + $0x68] sm:$0x3]
    %v103 = vld [vmem:[#allocation7] sm:$0xff]
    %v104 = vld [vmem:[#allocation7 + $0x8] sm:$0xff]
    %v105 = vld [vmem:[#allocation7 + $0x10] sm:$0xff]
    %v106 = vld [vmem:[#allocation7 + $0x18] sm:$0xff]
    %v107 = vld [vmem:[#allocation7 + $0x20] sm:$0xff]
    %v108 = vld [vmem:[#allocation7 + $0x28] sm:$0xff]
    %v109 = vld [vmem:[#allocation7 + $0x30] sm:$0xff]
    %v110 = vld [vmem:[#allocation7 + $0x38] sm:$0xff]
    %v111 = vld [vmem:[#allocation7 + $0x40] sm:$0xff]
    %v112 = vld [vmem:[#allocation7 + $0x48] sm:$0xff]
    %v113 = vld [vmem:[#allocation7 + $0x50] sm:$0xff]
    %v114 = vld [vmem:[#allocation7 + $0x58] sm:$0xff]
    %v115 = vld [vmem:[#allocation7 + $0x60] sm:$0x3]
    %v116 = vld [vmem:[#allocation7 + $0x68] sm:$0x3]
    %v117 = vld [vmem:[%s4] sm:$0x3]
    %v118 = vld [vmem:[%s0] sm:$0xf]
    %vm119 = vcmask 408576
    %v121 = vsel %vm119, 0.0, 0
    %vm123 = vcmask 1041408
    %v125 = vsel %vm123, %v87, 0
    %v128 = vsel %vm123, %v88, 0
    %130 = vmatpush.msra.mxu0 0.0
    %131 = vmatpush.msra.mxu0 0.0
    %132 = vmatpush.msra.mxu0 0.0
    %133 = vmatpush.msra.mxu0 0.0
    %134 = vmatpush.msra.mxu0 0.0
    %135 = vmatpush.msra.mxu0 0.0
    %136 = vmatpush.msra.mxu0 0.0
    %137 = vmatpush.msra.mxu0 0.0
    %138 = vmatpush.msra.mxu0 0.0
    %139 = vmatpush.msra.mxu0 %v125
    %140 = vmatpush.msra.mxu0 %v85
    %141 = vmatpush.msra.mxu0 %v83
    %142 = vmatpush.msra.mxu0 %v81
    %143 = vmatpush.msra.mxu0 %v79
    %144 = vmatpush.msra.mxu0 %v77
    %145 = vmatpush.msra.mxu0 %v75
    %146 = vmatmul.f32.gmra.mxu0 %v121
    %v147 = vpop.f32.mrf.mxu0
    %v148 = vadd.f32 0.0, %v147
    %149 = vdwg.mxu0
    %150 = vmatpush.msra.mxu0 0.0
    %151 = vmatpush.msra.mxu0 0.0
    %152 = vmatpush.msra.mxu0 0.0
    %153 = vmatpush.msra.mxu0 0.0
    %154 = vmatpush.msra.mxu0 0.0
    %155 = vmatpush.msra.mxu0 0.0
    %156 = vmatpush.msra.mxu0 0.0
    %157 = vmatpush.msra.mxu0 0.0
    %158 = vmatpush.msra.mxu0 0.0
    %159 = vmatpush.msra.mxu0 %v128
    %160 = vmatpush.msra.mxu0 %v86
    %161 = vmatpush.msra.mxu0 %v84
    %162 = vmatpush.msra.mxu0 %v82
    %163 = vmatpush.msra.mxu0 %v80
    %164 = vmatpush.msra.mxu0 %v78
    %165 = vmatpush.msra.mxu0 %v76
    %166 = vmatmul.f32.gmra.mxu0 %v121
    %v167 = vpop.f32.mrf.mxu0
    %v168 = vadd.f32 0.0, %v167
    %169 = vdwg.mxu0
    %v172 = vrot.slane %v168, 6
    %v173 = vsel %vm123, %v148, %v172
    %v175 = vadd.f32 %v118, %v173
    %v176 = vxor.u32 %v175, 2147483648
    %v177 = vmul.f32 %v176, 1.442695
    %v178 = vpow.pop %v177
    %v179 = vadd.f32 %v178, 1.0
    %v180 = vrcp.pop %v179
    %v181 = vmul.f32 %v179, %v180
    %v182 = vsub.f32 1.0, %v181
    %v183 = vmul.f32 %v180, %v182
    %v184 = vadd.f32 %v180, %v183
    %vm185 = vweird.f32 %v179
    %vm186 = vweird.f32 %v180
    %vm187 = vmor %vm185, %vm186
    %v188 = vsel %vm187, %v180, %v184
    %v189 = vand.u32 2147483647, %v179
    %vm190 = vcmp.eq.f32.partialorder %v189, 8.507059e+37
    %v191 = vand.u32 %v179, 2147483648
    %v192 = vor.u32 1.1754944e-38, %v191
    %v193 = vsel %vm190, %v192, %v188
    %v194 = vmul.f32 1.0, %v193
    %196 = vrot.lane.b32.xlu0 %v175, 106
    %v197 = vpop.permute.xlu0 %196
    %v198 = vrot.slane %v197, 2
    %v200 = vtanh.pop %v198
    %v201 = vmul.f32 %v194, 0.0
    %v202 = vmul.f32 %v194, %v200
    %204 = vrot.lane.b32.xlu0 %v202, 50
    %v205 = vpop.permute.xlu0 %204
    %v207 = vadd.f32 %v201, %v205
    %v208 = vtanh.pop %v207
    %210 = vrot.lane.b32.xlu0 %v208, 50
    %v211 = vpop.permute.xlu0 %210
    %v212 = vrot.slane %v211, 6
    %v213 = vsel %vm119, %v212, %v211
    %v215 = vmul.f32 %v194, %v213
    %v217 = vsel %vm123, %v115, 0
    %v220 = vsel %vm123, %v116, 0
    %222 = vmatpush.msra.mxu0 0.0
    %223 = vmatpush.msra.mxu0 0.0
    %224 = vmatpush.msra.mxu0 0.0
    %225 = vmatpush.msra.mxu0 0.0
    %226 = vmatpush.msra.mxu0 0.0
    %227 = vmatpush.msra.mxu0 0.0
    %228 = vmatpush.msra.mxu0 0.0
    %229 = vmatpush.msra.mxu0 0.0
    %230 = vmatpush.msra.mxu0 0.0
    %231 = vmatpush.msra.mxu0 %v217
    %232 = vmatpush.msra.mxu0 %v113
    %233 = vmatpush.msra.mxu0 %v111
    %234 = vmatpush.msra.mxu0 %v109
    %235 = vmatpush.msra.mxu0 %v107
    %236 = vmatpush.msra.mxu0 %v105
    %237 = vmatpush.msra.mxu0 %v103
    %238 = vmatmul.f32.gmra.mxu0 %v121
    %v239 = vpop.f32.mrf.mxu0
    %v240 = vadd.f32 0.0, %v239
    %241 = vdwg.mxu0
    %242 = vmatpush.msra.mxu0 0.0
    %243 = vmatpush.msra.mxu0 0.0
    %244 = vmatpush.msra.mxu0 0.0
    %245 = vmatpush.msra.mxu0 0.0
    %246 = vmatpush.msra.mxu0 0.0
    %247 = vmatpush.msra.mxu0 0.0
    %248 = vmatpush.msra.mxu0 0.0
    %249 = vmatpush.msra.mxu0 0.0
    %250 = vmatpush.msra.mxu0 0.0
    %251 = vmatpush.msra.mxu0 %v220
    %252 = vmatpush.msra.mxu0 %v114
    %253 = vmatpush.msra.mxu0 %v112
    %254 = vmatpush.msra.mxu0 %v110
    %255 = vmatpush.msra.mxu0 %v108
    %256 = vmatpush.msra.mxu0 %v106
    %257 = vmatpush.msra.mxu0 %v104
    %258 = vmatmul.f32.gmra.mxu0 %v121
    %v259 = vpop.f32.mrf.mxu0
    %v260 = vadd.f32 0.0, %v259
    %261 = vdwg.mxu0
    %263 = vst [vmem:[#allocation1] ss:$4 sm:$0xff] %v215
    %v264 = vld.sshfl [vmem:[#allocation1] sm:$0xff pattern:$0x73625140]
    %v265 = vld.sshfl [vmem:[#allocation1 + $0x8] sm:$0xff pattern:$0x73625140]
    %266 = vrot.lane.b32.xlu0 %v264, 28
    %v267 = vpop.permute.xlu0 %266
    %268 = vrot.lane.b32.xlu0 %v265, 28
    %v269 = vpop.permute.xlu0 %268
    %vm270 = vcmask 228352
    %v271 = vsel %vm270, %v267, %v269
    %v272 = vsel %vm119, %v271, 0
    %v275 = vsel %vm123, %v101, 0
    %v278 = vsel %vm123, %v102, 0
    %280 = vmatpush.msra.mxu0 0.0
    %281 = vmatpush.msra.mxu0 0.0
    %282 = vmatpush.msra.mxu0 0.0
    %283 = vmatpush.msra.mxu0 0.0
    %284 = vmatpush.msra.mxu0 0.0
    %285 = vmatpush.msra.mxu0 0.0
    %286 = vmatpush.msra.mxu0 0.0
    %287 = vmatpush.msra.mxu0 0.0
    %288 = vmatpush.msra.mxu0 0.0
    %289 = vmatpush.msra.mxu0 %v275
    %290 = vmatpush.msra.mxu0 %v99
    %291 = vmatpush.msra.mxu0 %v97
    %292 = vmatpush.msra.mxu0 %v95
    %293 = vmatpush.msra.mxu0 %v93
    %294 = vmatpush.msra.mxu0 %v91
    %295 = vmatpush.msra.mxu0 %v89
    %296 = vmatmul.f32.gmra.mxu0 %v272
    %v297 = vpop.f32.mrf.mxu0
    %v298 = vadd.f32 %v240, %v297
    %299 = vdwg.mxu0
    %300 = vmatpush.msra.mxu0 0.0
    %301 = vmatpush.msra.mxu0 0.0
    %302 = vmatpush.msra.mxu0 0.0
    %303 = vmatpush.msra.mxu0 0.0
    %304 = vmatpush.msra.mxu0 0.0
    %305 = vmatpush.msra.mxu0 0.0
    %306 = vmatpush.msra.mxu0 0.0
    %307 = vmatpush.msra.mxu0 0.0
    %308 = vmatpush.msra.mxu0 0.0
    %309 = vmatpush.msra.mxu0 %v278
    %310 = vmatpush.msra.mxu0 %v100
    %311 = vmatpush.msra.mxu0 %v98
    %312 = vmatpush.msra.mxu0 %v96
    %313 = vmatpush.msra.mxu0 %v94
    %314 = vmatpush.msra.mxu0 %v92
    %315 = vmatpush.msra.mxu0 %v90
    %316 = vmatmul.f32.gmra.mxu0 %v272
    %v317 = vpop.f32.mrf.mxu0
    %v318 = vadd.f32 %v260, %v317
    %319 = vdwg.mxu0
    %v321 = vperm.slane %v117, 0
    %v322 = vperm.slane %v117, 1
    %v325 = vadd.f32 %v298, %v321
    %v326 = vadd.f32 %v318, %v322
    %v327 = vxor.u32 %v325, 2147483648
    %v328 = vxor.u32 %v326, 2147483648
    %v329 = vmul.f32 %v327, 1.442695
    %v330 = vpow.pop %v329
    %v331 = vmul.f32 %v328, 1.442695
    %v332 = vpow.pop %v331
    %v333 = vadd.f32 %v330, 1.0
    %v334 = vadd.f32 %v332, 1.0
    %v335 = vrcp.pop %v333
    %v336 = vmul.f32 %v333, %v335
    %v337 = vsub.f32 1.0, %v336
    %v338 = vmul.f32 %v335, %v337
    %v339 = vadd.f32 %v335, %v338
    %vm340 = vweird.f32 %v333
    %vm341 = vweird.f32 %v335
    %vm342 = vmor %vm340, %vm341
    %v343 = vsel %vm342, %v335, %v339
    %v344 = vand.u32 2147483647, %v333
    %vm345 = vcmp.eq.f32.partialorder %v344, 8.507059e+37
    %v346 = vand.u32 %v333, 2147483648
    %v347 = vor.u32 1.1754944e-38, %v346
    %v348 = vsel %vm345, %v347, %v343
    %v349 = vmul.f32 1.0, %v348
    %v350 = vrcp.pop %v334
    %v351 = vmul.f32 %v334, %v350
    %v352 = vsub.f32 1.0, %v351
    %v353 = vmul.f32 %v350, %v352
    %v354 = vadd.f32 %v350, %v353
    %vm355 = vweird.f32 %v334
    %vm356 = vweird.f32 %v350
    %vm357 = vmor %vm355, %vm356
    %v358 = vsel %vm357, %v350, %v354
    %v359 = vand.u32 2147483647, %v334
    %vm360 = vcmp.eq.f32.partialorder %v359, 8.507059e+37
    %v361 = vand.u32 %v334, 2147483648
    %v362 = vor.u32 1.1754944e-38, %v361
    %v363 = vsel %vm360, %v362, %v358
    %v364 = vmul.f32 1.0, %v363
    %v365 = vtanh.pop %v326
    %v366 = vmul.f32 %v349, 0.0
    %368 = vrot.lane.b32.xlu0 %v365, 106
    %v369 = vpop.permute.xlu0 %368
    %v371 = vmul.f32 %v349, %v369
    %373 = vrot.lane.b32.xlu0 %v371, 50
    %v374 = vpop.permute.xlu0 %373
    %v376 = vadd.f32 %v366, %v374
    %v377 = vtanh.pop %v376
    %379 = vrot.lane.b32.xlu0 %v377, 50
    %v380 = vpop.permute.xlu0 %379
    %v382 = vmul.f32 %v349, %v380
    %v383 = vmul.f32 %v364, %v380
    %s384 = scalar_lea.vmem %s0, 4
    %v385 = vld [vmem:[%s384] sm:$0xf]
    %386 = vst [vmem:[#allocation1] ss:$4 sm:$0xff] %v215
    %v387 = vld.sshfl [vmem:[#allocation1] sm:$0xff pattern:$0x73625140]
    %v388 = vld.sshfl [vmem:[#allocation1 + $0x8] sm:$0xff pattern:$0x73625140]
    %389 = vrot.lane.b32.xlu0 %v387, 28
    %v390 = vpop.permute.xlu0 %389
    %391 = vrot.lane.b32.xlu0 %v388, 28
    %v392 = vpop.permute.xlu0 %391
    %v393 = vsel %vm270, %v390, %v392
    %v394 = vsel %vm119, %v393, 0
    %396 = vmatpush.msra.mxu0 0.0
    %397 = vmatpush.msra.mxu0 0.0
    %398 = vmatpush.msra.mxu0 0.0
    %399 = vmatpush.msra.mxu0 0.0
    %400 = vmatpush.msra.mxu0 0.0
    %401 = vmatpush.msra.mxu0 0.0
    %402 = vmatpush.msra.mxu0 0.0
    %403 = vmatpush.msra.mxu0 0.0
    %404 = vmatpush.msra.mxu0 0.0
    %405 = vmatpush.msra.mxu0 %v125
    %406 = vmatpush.msra.mxu0 %v85
    %407 = vmatpush.msra.mxu0 %v83
    %408 = vmatpush.msra.mxu0 %v81
    %409 = vmatpush.msra.mxu0 %v79
    %410 = vmatpush.msra.mxu0 %v77
    %411 = vmatpush.msra.mxu0 %v75
    %412 = vmatmul.f32.gmra.mxu0 %v394
    %v413 = vpop.f32.mrf.mxu0
    %v414 = vadd.f32 0.0, %v413
    %415 = vdwg.mxu0
    %416 = vmatpush.msra.mxu0 0.0
    %417 = vmatpush.msra.mxu0 0.0
    %418 = vmatpush.msra.mxu0 0.0
    %419 = vmatpush.msra.mxu0 0.0
    %420 = vmatpush.msra.mxu0 0.0
    %421 = vmatpush.msra.mxu0 0.0
    %422 = vmatpush.msra.mxu0 0.0
    %423 = vmatpush.msra.mxu0 0.0
    %424 = vmatpush.msra.mxu0 0.0
    %425 = vmatpush.msra.mxu0 %v128
    %426 = vmatpush.msra.mxu0 %v86
    %427 = vmatpush.msra.mxu0 %v84
    %428 = vmatpush.msra.mxu0 %v82
    %429 = vmatpush.msra.mxu0 %v80
    %430 = vmatpush.msra.mxu0 %v78
    %431 = vmatpush.msra.mxu0 %v76
    %432 = vmatmul.f32.gmra.mxu0 %v394
    %v433 = vpop.f32.mrf.mxu0
    %v434 = vadd.f32 0.0, %v433
    %435 = vdwg.mxu0
    %v438 = vrot.slane %v434, 6
    %v439 = vsel %vm123, %v414, %v438
    %v441 = vadd.f32 %v385, %v439
    %v442 = vxor.u32 %v441, 2147483648
    %v443 = vmul.f32 %v442, 1.442695
    %v444 = vpow.pop %v443
    %v445 = vadd.f32 %v444, 1.0
    %v446 = vrcp.pop %v445
    %v447 = vmul.f32 %v445, %v446
    %v448 = vsub.f32 1.0, %v447
    %v449 = vmul.f32 %v446, %v448
    %v450 = vadd.f32 %v446, %v449
    %vm451 = vweird.f32 %v445
    %vm452 = vweird.f32 %v446
    %vm453 = vmor %vm451, %vm452
    %v454 = vsel %vm453, %v446, %v450
    %v455 = vand.u32 2147483647, %v445
    %vm456 = vcmp.eq.f32.partialorder %v455, 8.507059e+37
    %v457 = vand.u32 %v445, 2147483648
    %v458 = vor.u32 1.1754944e-38, %v457
    %v459 = vsel %vm456, %v458, %v454
    %v460 = vmul.f32 1.0, %v459
    %462 = vrot.lane.b32.xlu0 %v441, 106
    %v463 = vpop.permute.xlu0 %462
    %v464 = vrot.slane %v463, 2
    %v466 = vtanh.pop %v464
    %v467 = vmul.f32 %v460, %v207
    %v468 = vmul.f32 %v460, %v466
    %470 = vrot.lane.b32.xlu0 %v468, 50
    %v471 = vpop.permute.xlu0 %470
    %v473 = vadd.f32 %v467, %v471
    %v474 = vtanh.pop %v473
    %476 = vrot.lane.b32.xlu0 %v474, 50
    %v477 = vpop.permute.xlu0 %476
    %v478 = vrot.slane %v477, 6
    %v479 = vsel %vm119, %v478, %v477
    %v481 = vmul.f32 %v460, %v479
    %484 = vrot.lane.b32.xlu0 %v382, 28
    %v485 = vpop.permute.xlu0 %484
    %486 = vrot.lane.b32.xlu0 %v383, 28
    %v487 = vpop.permute.xlu0 %486
    %v488 = vsel %vm270, %v485, %v487
    %v489 = vsel %vm119, %v488, 0
    %491 = vmatpush.msra.mxu0 0.0
    %492 = vmatpush.msra.mxu0 0.0
    %493 = vmatpush.msra.mxu0 0.0
    %494 = vmatpush.msra.mxu0 0.0
    %495 = vmatpush.msra.mxu0 0.0
    %496 = vmatpush.msra.mxu0 0.0
    %497 = vmatpush.msra.mxu0 0.0
    %498 = vmatpush.msra.mxu0 0.0
    %499 = vmatpush.msra.mxu0 0.0
    %500 = vmatpush.msra.mxu0 %v217
    %501 = vmatpush.msra.mxu0 %v113
    %502 = vmatpush.msra.mxu0 %v111
    %503 = vmatpush.msra.mxu0 %v109
    %504 = vmatpush.msra.mxu0 %v107
    %505 = vmatpush.msra.mxu0 %v105
    %506 = vmatpush.msra.mxu0 %v103
    %507 = vmatmul.f32.gmra.mxu0 %v489
    %v508 = vpop.f32.mrf.mxu0
    %v509 = vadd.f32 0.0, %v508
    %510 = vdwg.mxu0
    %511 = vmatpush.msra.mxu0 0.0
    %512 = vmatpush.msra.mxu0 0.0
    %513 = vmatpush.msra.mxu0 0.0
    %514 = vmatpush.msra.mxu0 0.0
    %515 = vmatpush.msra.mxu0 0.0
    %516 = vmatpush.msra.mxu0 0.0
    %517 = vmatpush.msra.mxu0 0.0
    %518 = vmatpush.msra.mxu0 0.0
    %519 = vmatpush.msra.mxu0 0.0
    %520 = vmatpush.msra.mxu0 %v220
    %521 = vmatpush.msra.mxu0 %v114
    %522 = vmatpush.msra.mxu0 %v112
    %523 = vmatpush.msra.mxu0 %v110
    %524 = vmatpush.msra.mxu0 %v108
    %525 = vmatpush.msra.mxu0 %v106
    %526 = vmatpush.msra.mxu0 %v104
    %527 = vmatmul.f32.gmra.mxu0 %v489
    %v528 = vpop.f32.mrf.mxu0
    %v529 = vadd.f32 0.0, %v528
    %530 = vdwg.mxu0
    %532 = vst [vmem:[#allocation1] ss:$4 sm:$0xff] %v481
    %v533 = vld.sshfl [vmem:[#allocation1] sm:$0xff pattern:$0x73625140]
    %v534 = vld.sshfl [vmem:[#allocation1 + $0x8] sm:$0xff pattern:$0x73625140]
    %535 = vrot.lane.b32.xlu0 %v533, 28
    %v536 = vpop.permute.xlu0 %535
    %537 = vrot.lane.b32.xlu0 %v534, 28
    %v538 = vpop.permute.xlu0 %537
    %v539 = vsel %vm270, %v536, %v538
    %v540 = vsel %vm119, %v539, 0
    %542 = vmatpush.msra.mxu0 0.0
    %543 = vmatpush.msra.mxu0 0.0
    %544 = vmatpush.msra.mxu0 0.0
    %545 = vmatpush.msra.mxu0 0.0
    %546 = vmatpush.msra.mxu0 0.0
    %547 = vmatpush.msra.mxu0 0.0
    %548 = vmatpush.msra.mxu0 0.0
    %549 = vmatpush.msra.mxu0 0.0
    %550 = vmatpush.msra.mxu0 0.0
    %551 = vmatpush.msra.mxu0 %v275
    %552 = vmatpush.msra.mxu0 %v99
    %553 = vmatpush.msra.mxu0 %v97
    %554 = vmatpush.msra.mxu0 %v95
    %555 = vmatpush.msra.mxu0 %v93
    %556 = vmatpush.msra.mxu0 %v91
    %557 = vmatpush.msra.mxu0 %v89
    %558 = vmatmul.f32.gmra.mxu0 %v540
    %v559 = vpop.f32.mrf.mxu0
    %v560 = vadd.f32 %v509, %v559
    %561 = vdwg.mxu0
    %562 = vmatpush.msra.mxu0 0.0
    %563 = vmatpush.msra.mxu0 0.0
    %564 = vmatpush.msra.mxu0 0.0
    %565 = vmatpush.msra.mxu0 0.0
    %566 = vmatpush.msra.mxu0 0.0
    %567 = vmatpush.msra.mxu0 0.0
    %568 = vmatpush.msra.mxu0 0.0
    %569 = vmatpush.msra.mxu0 0.0
    %570 = vmatpush.msra.mxu0 0.0
    %571 = vmatpush.msra.mxu0 %v278
    %572 = vmatpush.msra.mxu0 %v100
    %573 = vmatpush.msra.mxu0 %v98
    %574 = vmatpush.msra.mxu0 %v96
    %575 = vmatpush.msra.mxu0 %v94
    %576 = vmatpush.msra.mxu0 %v92
    %577 = vmatpush.msra.mxu0 %v90
    %578 = vmatmul.f32.gmra.mxu0 %v540
    %v579 = vpop.f32.mrf.mxu0
    %v580 = vadd.f32 %v529, %v579
    %581 = vdwg.mxu0
    %v582 = vadd.f32 %v560, %v321
    %v583 = vadd.f32 %v580, %v322
    %v584 = vxor.u32 %v582, 2147483648
    %v585 = vxor.u32 %v583, 2147483648
    %v586 = vmul.f32 %v584, 1.442695
    %v587 = vpow.pop %v586
    %v588 = vmul.f32 %v585, 1.442695
    %v589 = vpow.pop %v588
    %v590 = vadd.f32 %v587, 1.0
    %v591 = vadd.f32 %v589, 1.0
    %v592 = vrcp.pop %v590
    %v593 = vmul.f32 %v590, %v592
    %v594 = vsub.f32 1.0, %v593
    %v595 = vmul.f32 %v592, %v594
    %v596 = vadd.f32 %v592, %v595
    %vm597 = vweird.f32 %v590
    %vm598 = vweird.f32 %v592
    %vm599 = vmor %vm597, %vm598
    %v600 = vsel %vm599, %v592, %v596
    %v601 = vand.u32 2147483647, %v590
    %vm602 = vcmp.eq.f32.partialorder %v601, 8.507059e+37
    %v603 = vand.u32 %v590, 2147483648
    %v604 = vor.u32 1.1754944e-38, %v603
    %v605 = vsel %vm602, %v604, %v600
    %v606 = vmul.f32 1.0, %v605
    %v607 = vrcp.pop %v591
    %v608 = vmul.f32 %v591, %v607
    %v609 = vsub.f32 1.0, %v608
    %v610 = vmul.f32 %v607, %v609
    %v611 = vadd.f32 %v607, %v610
    %vm612 = vweird.f32 %v591
    %vm613 = vweird.f32 %v607
    %vm614 = vmor %vm612, %vm613
    %v615 = vsel %vm614, %v607, %v611
    %v616 = vand.u32 2147483647, %v591
    %vm617 = vcmp.eq.f32.partialorder %v616, 8.507059e+37
    %v618 = vand.u32 %v591, 2147483648
    %v619 = vor.u32 1.1754944e-38, %v618
    %v620 = vsel %vm617, %v619, %v615
    %v621 = vmul.f32 1.0, %v620
    %v622 = vtanh.pop %v583
    %v623 = vmul.f32 %v606, %v376
    %625 = vrot.lane.b32.xlu0 %v622, 106
    %v626 = vpop.permute.xlu0 %625
    %v628 = vmul.f32 %v606, %v626
    %630 = vrot.lane.b32.xlu0 %v628, 50
    %v631 = vpop.permute.xlu0 %630
    %v633 = vadd.f32 %v623, %v631
    %v634 = vtanh.pop %v633
    %636 = vrot.lane.b32.xlu0 %v634, 50
    %v637 = vpop.permute.xlu0 %636
    %v639 = vmul.f32 %v606, %v637
    %v640 = vmul.f32 %v621, %v637
    %s641 = scalar_lea.vmem %s0, 8
    %v642 = vld [vmem:[%s641] sm:$0xf]
    %643 = vst [vmem:[#allocation1] ss:$4 sm:$0xff] %v481
    %v644 = vld.sshfl [vmem:[#allocation1] sm:$0xff pattern:$0x73625140]
    %v645 = vld.sshfl [vmem:[#allocation1 + $0x8] sm:$0xff pattern:$0x73625140]
    %646 = vrot.lane.b32.xlu0 %v644, 28
    %v647 = vpop.permute.xlu0 %646
    %648 = vrot.lane.b32.xlu0 %v645, 28
    %v649 = vpop.permute.xlu0 %648
    %v650 = vsel %vm270, %v647, %v649
    %v651 = vsel %vm119, %v650, 0
    %653 = vmatpush.msra.mxu0 0.0
    %654 = vmatpush.msra.mxu0 0.0
    %655 = vmatpush.msra.mxu0 0.0
    %656 = vmatpush.msra.mxu0 0.0
    %657 = vmatpush.msra.mxu0 0.0
    %658 = vmatpush.msra.mxu0 0.0
    %659 = vmatpush.msra.mxu0 0.0
    %660 = vmatpush.msra.mxu0 0.0
    %661 = vmatpush.msra.mxu0 0.0
    %662 = vmatpush.msra.mxu0 %v125
    %663 = vmatpush.msra.mxu0 %v85
    %664 = vmatpush.msra.mxu0 %v83
    %665 = vmatpush.msra.mxu0 %v81
    %666 = vmatpush.msra.mxu0 %v79
    %667 = vmatpush.msra.mxu0 %v77
    %668 = vmatpush.msra.mxu0 %v75
    %669 = vmatmul.f32.gmra.mxu0 %v651
    %v670 = vpop.f32.mrf.mxu0
    %v671 = vadd.f32 0.0, %v670
    %672 = vdwg.mxu0
    %673 = vmatpush.msra.mxu0 0.0
    %674 = vmatpush.msra.mxu0 0.0
    %675 = vmatpush.msra.mxu0 0.0
    %676 = vmatpush.msra.mxu0 0.0
    %677 = vmatpush.msra.mxu0 0.0
    %678 = vmatpush.msra.mxu0 0.0
    %679 = vmatpush.msra.mxu0 0.0
    %680 = vmatpush.msra.mxu0 0.0
    %681 = vmatpush.msra.mxu0 0.0
    %682 = vmatpush.msra.mxu0 %v128
    %683 = vmatpush.msra.mxu0 %v86
    %684 = vmatpush.msra.mxu0 %v84
    %685 = vmatpush.msra.mxu0 %v82
    %686 = vmatpush.msra.mxu0 %v80
    %687 = vmatpush.msra.mxu0 %v78
    %688 = vmatpush.msra.mxu0 %v76
    %689 = vmatmul.f32.gmra.mxu0 %v651
    %v690 = vpop.f32.mrf.mxu0
    %v691 = vadd.f32 0.0, %v690
    %692 = vdwg.mxu0
    %v695 = vrot.slane %v691, 6
    %v696 = vsel %vm123, %v671, %v695
    %v698 = vadd.f32 %v642, %v696
    %v699 = vxor.u32 %v698, 2147483648
    %v700 = vmul.f32 %v699, 1.442695
    %v701 = vpow.pop %v700
    %v702 = vadd.f32 %v701, 1.0
    %v703 = vrcp.pop %v702
    %v704 = vmul.f32 %v702, %v703
    %v705 = vsub.f32 1.0, %v704
    %v706 = vmul.f32 %v703, %v705
    %v707 = vadd.f32 %v703, %v706
    %vm708 = vweird.f32 %v702
    %vm709 = vweird.f32 %v703
    %vm710 = vmor %vm708, %vm709
    %v711 = vsel %vm710, %v703, %v707
    %v712 = vand.u32 2147483647, %v702
    %vm713 = vcmp.eq.f32.partialorder %v712, 8.507059e+37
    %v714 = vand.u32 %v702, 2147483648
    %v715 = vor.u32 1.1754944e-38, %v714
    %v716 = vsel %vm713, %v715, %v711
    %v717 = vmul.f32 1.0, %v716
    %719 = vrot.lane.b32.xlu0 %v698, 106
    %v720 = vpop.permute.xlu0 %719
    %v721 = vrot.slane %v720, 2
    %v723 = vtanh.pop %v721
    %v724 = vmul.f32 %v717, %v473
    %v725 = vmul.f32 %v717, %v723
    %727 = vrot.lane.b32.xlu0 %v725, 50
    %v728 = vpop.permute.xlu0 %727
    %v730 = vadd.f32 %v724, %v728
    %v731 = vtanh.pop %v730
    %733 = vrot.lane.b32.xlu0 %v731, 50
    %v734 = vpop.permute.xlu0 %733
    %v735 = vrot.slane %v734, 6
    %v736 = vsel %vm119, %v735, %v734
    %v738 = vmul.f32 %v717, %v736
    %741 = vrot.lane.b32.xlu0 %v639, 28
    %v742 = vpop.permute.xlu0 %741
    %743 = vrot.lane.b32.xlu0 %v640, 28
    %v744 = vpop.permute.xlu0 %743
    %v745 = vsel %vm270, %v742, %v744
    %v746 = vsel %vm119, %v745, 0
    %748 = vmatpush.msra.mxu0 0.0
    %749 = vmatpush.msra.mxu0 0.0
    %750 = vmatpush.msra.mxu0 0.0
    %751 = vmatpush.msra.mxu0 0.0
    %752 = vmatpush.msra.mxu0 0.0
    %753 = vmatpush.msra.mxu0 0.0
    %754 = vmatpush.msra.mxu0 0.0
    %755 = vmatpush.msra.mxu0 0.0
    %756 = vmatpush.msra.mxu0 0.0
    %757 = vmatpush.msra.mxu0 %v217
    %758 = vmatpush.msra.mxu0 %v113
    %759 = vmatpush.msra.mxu0 %v111
    %760 = vmatpush.msra.mxu0 %v109
    %761 = vmatpush.msra.mxu0 %v107
    %762 = vmatpush.msra.mxu0 %v105
    %763 = vmatpush.msra.mxu0 %v103
    %764 = vmatmul.f32.gmra.mxu0 %v746
    %v765 = vpop.f32.mrf.mxu0
    %v766 = vadd.f32 0.0, %v765
    %767 = vdwg.mxu0
    %768 = vmatpush.msra.mxu0 0.0
    %769 = vmatpush.msra.mxu0 0.0
    %770 = vmatpush.msra.mxu0 0.0
    %771 = vmatpush.msra.mxu0 0.0
    %772 = vmatpush.msra.mxu0 0.0
    %773 = vmatpush.msra.mxu0 0.0
    %774 = vmatpush.msra.mxu0 0.0
    %775 = vmatpush.msra.mxu0 0.0
    %776 = vmatpush.msra.mxu0 0.0
    %777 = vmatpush.msra.mxu0 %v220
    %778 = vmatpush.msra.mxu0 %v114
    %779 = vmatpush.msra.mxu0 %v112
    %780 = vmatpush.msra.mxu0 %v110
    %781 = vmatpush.msra.mxu0 %v108
    %782 = vmatpush.msra.mxu0 %v106
    %783 = vmatpush.msra.mxu0 %v104
    %784 = vmatmul.f32.gmra.mxu0 %v746
    %v785 = vpop.f32.mrf.mxu0
    %v786 = vadd.f32 0.0, %v785
    %787 = vdwg.mxu0
    %789 = vst [vmem:[#allocation1] ss:$4 sm:$0xff] %v738
    %v790 = vld.sshfl [vmem:[#allocation1] sm:$0xff pattern:$0x73625140]
    %v791 = vld.sshfl [vmem:[#allocation1 + $0x8] sm:$0xff pattern:$0x73625140]
    %792 = vrot.lane.b32.xlu0 %v790, 28
    %v793 = vpop.permute.xlu0 %792
    %794 = vrot.lane.b32.xlu0 %v791, 28
    %v795 = vpop.permute.xlu0 %794
    %v796 = vsel %vm270, %v793, %v795
    %v797 = vsel %vm119, %v796, 0
    %799 = vmatpush.msra.mxu0 0.0
    %800 = vmatpush.msra.mxu0 0.0
    %801 = vmatpush.msra.mxu0 0.0
    %802 = vmatpush.msra.mxu0 0.0
    %803 = vmatpush.msra.mxu0 0.0
    %804 = vmatpush.msra.mxu0 0.0
    %805 = vmatpush.msra.mxu0 0.0
    %806 = vmatpush.msra.mxu0 0.0
    %807 = vmatpush.msra.mxu0 0.0
    %808 = vmatpush.msra.mxu0 %v275
    %809 = vmatpush.msra.mxu0 %v99
    %810 = vmatpush.msra.mxu0 %v97
    %811 = vmatpush.msra.mxu0 %v95
    %812 = vmatpush.msra.mxu0 %v93
    %813 = vmatpush.msra.mxu0 %v91
    %814 = vmatpush.msra.mxu0 %v89
    %815 = vmatmul.f32.gmra.mxu0 %v797
    %v816 = vpop.f32.mrf.mxu0
    %v817 = vadd.f32 %v766, %v816
    %818 = vdwg.mxu0
    %819 = vmatpush.msra.mxu0 0.0
    %820 = vmatpush.msra.mxu0 0.0
    %821 = vmatpush.msra.mxu0 0.0
    %822 = vmatpush.msra.mxu0 0.0
    %823 = vmatpush.msra.mxu0 0.0
    %824 = vmatpush.msra.mxu0 0.0
    %825 = vmatpush.msra.mxu0 0.0
    %826 = vmatpush.msra.mxu0 0.0
    %827 = vmatpush.msra.mxu0 0.0
    %828 = vmatpush.msra.mxu0 %v278
    %829 = vmatpush.msra.mxu0 %v100
    %830 = vmatpush.msra.mxu0 %v98
    %831 = vmatpush.msra.mxu0 %v96
    %832 = vmatpush.msra.mxu0 %v94
    %833 = vmatpush.msra.mxu0 %v92
    %834 = vmatpush.msra.mxu0 %v90
    %835 = vmatmul.f32.gmra.mxu0 %v797
    %v836 = vpop.f32.mrf.mxu0
    %v837 = vadd.f32 %v786, %v836
    %838 = vdwg.mxu0
    %v839 = vadd.f32 %v817, %v321
    %v840 = vadd.f32 %v837, %v322
    %v841 = vxor.u32 %v839, 2147483648
    %v842 = vxor.u32 %v840, 2147483648
    %v843 = vmul.f32 %v841, 1.442695
    %v844 = vpow.pop %v843
    %v845 = vmul.f32 %v842, 1.442695
    %v846 = vpow.pop %v845
    %v847 = vadd.f32 %v844, 1.0
    %v848 = vadd.f32 %v846, 1.0
    %v849 = vrcp.pop %v847
    %v850 = vmul.f32 %v847, %v849
    %v851 = vsub.f32 1.0, %v850
    %v852 = vmul.f32 %v849, %v851
    %v853 = vadd.f32 %v849, %v852
    %vm854 = vweird.f32 %v847
    %vm855 = vweird.f32 %v849
    %vm856 = vmor %vm854, %vm855
    %v857 = vsel %vm856, %v849, %v853
    %v858 = vand.u32 2147483647, %v847
    %vm859 = vcmp.eq.f32.partialorder %v858, 8.507059e+37
    %v860 = vand.u32 %v847, 2147483648
    %v861 = vor.u32 1.1754944e-38, %v860
    %v862 = vsel %vm859, %v861, %v857
    %v863 = vmul.f32 1.0, %v862
    %v864 = vrcp.pop %v848
    %v865 = vmul.f32 %v848, %v864
    %v866 = vsub.f32 1.0, %v865
    %v867 = vmul.f32 %v864, %v866
    %v868 = vadd.f32 %v864, %v867
    %vm869 = vweird.f32 %v848
    %vm870 = vweird.f32 %v864
    %vm871 = vmor %vm869, %vm870
    %v872 = vsel %vm871, %v864, %v868
    %v873 = vand.u32 2147483647, %v848
    %vm874 = vcmp.eq.f32.partialorder %v873, 8.507059e+37
    %v875 = vand.u32 %v848, 2147483648
    %v876 = vor.u32 1.1754944e-38, %v875
    %v877 = vsel %vm874, %v876, %v872
    %v878 = vmul.f32 1.0, %v877
    %v879 = vtanh.pop %v840
    %v880 = vmul.f32 %v863, %v633
    %882 = vrot.lane.b32.xlu0 %v879, 106
    %v883 = vpop.permute.xlu0 %882
    %v885 = vmul.f32 %v863, %v883
    %887 = vrot.lane.b32.xlu0 %v885, 50
    %v888 = vpop.permute.xlu0 %887
    %v890 = vadd.f32 %v880, %v888
    %v891 = vtanh.pop %v890
    %893 = vrot.lane.b32.xlu0 %v891, 50
    %v894 = vpop.permute.xlu0 %893
    %v896 = vmul.f32 %v863, %v894
    %v897 = vmul.f32 %v878, %v894
    %s898 = scalar_lea.vmem %s0, 12
    %v899 = vld [vmem:[%s898] sm:$0xf]
    %900 = vst [vmem:[#allocation1] ss:$4 sm:$0xff] %v738
    %v901 = vld.sshfl [vmem:[#allocation1] sm:$0xff pattern:$0x73625140]
    %v902 = vld.sshfl [vmem:[#allocation1 + $0x8] sm:$0xff pattern:$0x73625140]
    %903 = vrot.lane.b32.xlu0 %v901, 28
    %v904 = vpop.permute.xlu0 %903
    %905 = vrot.lane.b32.xlu0 %v902, 28
    %v906 = vpop.permute.xlu0 %905
    %v907 = vsel %vm270, %v904, %v906
    %v908 = vsel %vm119, %v907, 0
    %910 = vmatpush.msra.mxu0 0.0
    %911 = vmatpush.msra.mxu0 0.0
    %912 = vmatpush.msra.mxu0 0.0
    %913 = vmatpush.msra.mxu0 0.0
    %914 = vmatpush.msra.mxu0 0.0
    %915 = vmatpush.msra.mxu0 0.0
    %916 = vmatpush.msra.mxu0 0.0
    %917 = vmatpush.msra.mxu0 0.0
    %918 = vmatpush.msra.mxu0 0.0
    %919 = vmatpush.msra.mxu0 %v125
    %920 = vmatpush.msra.mxu0 %v85
    %921 = vmatpush.msra.mxu0 %v83
    %922 = vmatpush.msra.mxu0 %v81
    %923 = vmatpush.msra.mxu0 %v79
    %924 = vmatpush.msra.mxu0 %v77
    %925 = vmatpush.msra.mxu0 %v75
    %926 = vmatmul.f32.gmra.mxu0 %v908
    %v927 = vpop.f32.mrf.mxu0
    %v928 = vadd.f32 0.0, %v927
    %929 = vdwg.mxu0
    %930 = vmatpush.msra.mxu0 0.0
    %931 = vmatpush.msra.mxu0 0.0
    %932 = vmatpush.msra.mxu0 0.0
    %933 = vmatpush.msra.mxu0 0.0
    %934 = vmatpush.msra.mxu0 0.0
    %935 = vmatpush.msra.mxu0 0.0
    %936 = vmatpush.msra.mxu0 0.0
    %937 = vmatpush.msra.mxu0 0.0
    %938 = vmatpush.msra.mxu0 0.0
    %939 = vmatpush.msra.mxu0 %v128
    %940 = vmatpush.msra.mxu0 %v86
    %941 = vmatpush.msra.mxu0 %v84
    %942 = vmatpush.msra.mxu0 %v82
    %943 = vmatpush.msra.mxu0 %v80
    %944 = vmatpush.msra.mxu0 %v78
    %945 = vmatpush.msra.mxu0 %v76
    %946 = vmatmul.f32.gmra.mxu0 %v908
    %v947 = vpop.f32.mrf.mxu0
    %v948 = vadd.f32 0.0, %v947
    %949 = vdwg.mxu0
    %v952 = vrot.slane %v948, 6
    %v953 = vsel %vm123, %v928, %v952
    %v955 = vadd.f32 %v899, %v953
    %v956 = vxor.u32 %v955, 2147483648
    %v957 = vmul.f32 %v956, 1.442695
    %v958 = vpow.pop %v957
    %v959 = vadd.f32 %v958, 1.0
    %v960 = vrcp.pop %v959
    %v961 = vmul.f32 %v959, %v960
    %v962 = vsub.f32 1.0, %v961
    %v963 = vmul.f32 %v960, %v962
    %v964 = vadd.f32 %v960, %v963
    %vm965 = vweird.f32 %v959
    %vm966 = vweird.f32 %v960
    %vm967 = vmor %vm965, %vm966
    %v968 = vsel %vm967, %v960, %v964
    %v969 = vand.u32 2147483647, %v959
    %vm970 = vcmp.eq.f32.partialorder %v969, 8.507059e+37
    %v971 = vand.u32 %v959, 2147483648
    %v972 = vor.u32 1.1754944e-38, %v971
    %v973 = vsel %vm970, %v972, %v968
    %v974 = vmul.f32 1.0, %v973
    %976 = vrot.lane.b32.xlu0 %v955, 106
    %v977 = vpop.permute.xlu0 %976
    %v978 = vrot.slane %v977, 2
    %v980 = vtanh.pop %v978
    %v981 = vmul.f32 %v974, %v730
    %v982 = vmul.f32 %v974, %v980
    %984 = vrot.lane.b32.xlu0 %v982, 50
    %v985 = vpop.permute.xlu0 %984
    %v987 = vadd.f32 %v981, %v985
    %v988 = vtanh.pop %v987
    %990 = vrot.lane.b32.xlu0 %v988, 50
    %v991 = vpop.permute.xlu0 %990
    %v992 = vrot.slane %v991, 6
    %v993 = vsel %vm119, %v992, %v991
    %v995 = vmul.f32 %v974, %v993
    %998 = vrot.lane.b32.xlu0 %v896, 28
    %v999 = vpop.permute.xlu0 %998
    %1000 = vrot.lane.b32.xlu0 %v897, 28
    %v1001 = vpop.permute.xlu0 %1000
    %v1002 = vsel %vm270, %v999, %v1001
    %v1003 = vsel %vm119, %v1002, 0
    %1005 = vmatpush.msra.mxu0 0.0
    %1006 = vmatpush.msra.mxu0 0.0
    %1007 = vmatpush.msra.mxu0 0.0
    %1008 = vmatpush.msra.mxu0 0.0
    %1009 = vmatpush.msra.mxu0 0.0
    %1010 = vmatpush.msra.mxu0 0.0
    %1011 = vmatpush.msra.mxu0 0.0
    %1012 = vmatpush.msra.mxu0 0.0
    %1013 = vmatpush.msra.mxu0 0.0
    %1014 = vmatpush.msra.mxu0 %v217
    %1015 = vmatpush.msra.mxu0 %v113
    %1016 = vmatpush.msra.mxu0 %v111
    %1017 = vmatpush.msra.mxu0 %v109
    %1018 = vmatpush.msra.mxu0 %v107
    %1019 = vmatpush.msra.mxu0 %v105
    %1020 = vmatpush.msra.mxu0 %v103
    %1021 = vmatmul.f32.gmra.mxu0 %v1003
    %v1022 = vpop.f32.mrf.mxu0
    %v1023 = vadd.f32 0.0, %v1022
    %1024 = vdwg.mxu0
    %1025 = vmatpush.msra.mxu0 0.0
    %1026 = vmatpush.msra.mxu0 0.0
    %1027 = vmatpush.msra.mxu0 0.0
    %1028 = vmatpush.msra.mxu0 0.0
    %1029 = vmatpush.msra.mxu0 0.0
    %1030 = vmatpush.msra.mxu0 0.0
    %1031 = vmatpush.msra.mxu0 0.0
    %1032 = vmatpush.msra.mxu0 0.0
    %1033 = vmatpush.msra.mxu0 0.0
    %1034 = vmatpush.msra.mxu0 %v220
    %1035 = vmatpush.msra.mxu0 %v114
    %1036 = vmatpush.msra.mxu0 %v112
    %1037 = vmatpush.msra.mxu0 %v110
    %1038 = vmatpush.msra.mxu0 %v108
    %1039 = vmatpush.msra.mxu0 %v106
    %1040 = vmatpush.msra.mxu0 %v104
    %1041 = vmatmul.f32.gmra.mxu0 %v1003
    %v1042 = vpop.f32.mrf.mxu0
    %v1043 = vadd.f32 0.0, %v1042
    %1044 = vdwg.mxu0
    %1046 = vst [vmem:[#allocation1] ss:$4 sm:$0xff] %v995
    %v1047 = vld.sshfl [vmem:[#allocation1] sm:$0xff pattern:$0x73625140]
    %v1048 = vld.sshfl [vmem:[#allocation1 + $0x8] sm:$0xff pattern:$0x73625140]
    %1049 = vrot.lane.b32.xlu0 %v1047, 28
    %v1050 = vpop.permute.xlu0 %1049
    %1051 = vrot.lane.b32.xlu0 %v1048, 28
    %v1052 = vpop.permute.xlu0 %1051
    %v1053 = vsel %vm270, %v1050, %v1052
    %v1054 = vsel %vm119, %v1053, 0
    %1056 = vmatpush.msra.mxu0 0.0
    %1057 = vmatpush.msra.mxu0 0.0
    %1058 = vmatpush.msra.mxu0 0.0
    %1059 = vmatpush.msra.mxu0 0.0
    %1060 = vmatpush.msra.mxu0 0.0
    %1061 = vmatpush.msra.mxu0 0.0
    %1062 = vmatpush.msra.mxu0 0.0
    %1063 = vmatpush.msra.mxu0 0.0
    %1064 = vmatpush.msra.mxu0 0.0
    %1065 = vmatpush.msra.mxu0 %v275
    %1066 = vmatpush.msra.mxu0 %v99
    %1067 = vmatpush.msra.mxu0 %v97
    %1068 = vmatpush.msra.mxu0 %v95
    %1069 = vmatpush.msra.mxu0 %v93
    %1070 = vmatpush.msra.mxu0 %v91
    %1071 = vmatpush.msra.mxu0 %v89
    %1072 = vmatmul.f32.gmra.mxu0 %v1054
    %v1073 = vpop.f32.mrf.mxu0
    %v1074 = vadd.f32 %v1023, %v1073
    %1075 = vdwg.mxu0
    %1076 = vmatpush.msra.mxu0 0.0
    %1077 = vmatpush.msra.mxu0 0.0
    %1078 = vmatpush.msra.mxu0 0.0
    %1079 = vmatpush.msra.mxu0 0.0
    %1080 = vmatpush.msra.mxu0 0.0
    %1081 = vmatpush.msra.mxu0 0.0
    %1082 = vmatpush.msra.mxu0 0.0
    %1083 = vmatpush.msra.mxu0 0.0
    %1084 = vmatpush.msra.mxu0 0.0
    %1085 = vmatpush.msra.mxu0 %v278
    %1086 = vmatpush.msra.mxu0 %v100
    %1087 = vmatpush.msra.mxu0 %v98
    %1088 = vmatpush.msra.mxu0 %v96
    %1089 = vmatpush.msra.mxu0 %v94
    %1090 = vmatpush.msra.mxu0 %v92
    %1091 = vmatpush.msra.mxu0 %v90
    %1092 = vmatmul.f32.gmra.mxu0 %v1054
    %v1093 = vpop.f32.mrf.mxu0
    %v1094 = vadd.f32 %v1043, %v1093
    %1095 = vdwg.mxu0
    %v1096 = vadd.f32 %v1074, %v321
    %v1097 = vadd.f32 %v1094, %v322
    %v1098 = vxor.u32 %v1096, 2147483648
    %v1099 = vxor.u32 %v1097, 2147483648
    %v1100 = vmul.f32 %v1098, 1.442695
    %v1101 = vpow.pop %v1100
    %v1102 = vmul.f32 %v1099, 1.442695
    %v1103 = vpow.pop %v1102
    %v1104 = vadd.f32 %v1101, 1.0
    %v1105 = vadd.f32 %v1103, 1.0
    %v1106 = vrcp.pop %v1104
    %v1107 = vmul.f32 %v1104, %v1106
    %v1108 = vsub.f32 1.0, %v1107
    %v1109 = vmul.f32 %v1106, %v1108
    %v1110 = vadd.f32 %v1106, %v1109
    %vm1111 = vweird.f32 %v1104
    %vm1112 = vweird.f32 %v1106
    %vm1113 = vmor %vm1111, %vm1112
    %v1114 = vsel %vm1113, %v1106, %v1110
    %v1115 = vand.u32 2147483647, %v1104
    %vm1116 = vcmp.eq.f32.partialorder %v1115, 8.507059e+37
    %v1117 = vand.u32 %v1104, 2147483648
    %v1118 = vor.u32 1.1754944e-38, %v1117
    %v1119 = vsel %vm1116, %v1118, %v1114
    %v1120 = vmul.f32 1.0, %v1119
    %v1121 = vrcp.pop %v1105
    %v1122 = vmul.f32 %v1105, %v1121
    %v1123 = vsub.f32 1.0, %v1122
    %v1124 = vmul.f32 %v1121, %v1123
    %v1125 = vadd.f32 %v1121, %v1124
    %vm1126 = vweird.f32 %v1105
    %vm1127 = vweird.f32 %v1121
    %vm1128 = vmor %vm1126, %vm1127
    %v1129 = vsel %vm1128, %v1121, %v1125
    %v1130 = vand.u32 2147483647, %v1105
    %vm1131 = vcmp.eq.f32.partialorder %v1130, 8.507059e+37
    %v1132 = vand.u32 %v1105, 2147483648
    %v1133 = vor.u32 1.1754944e-38, %v1132
    %v1134 = vsel %vm1131, %v1133, %v1129
    %v1135 = vmul.f32 1.0, %v1134
    %v1136 = vtanh.pop %v1097
    %v1137 = vmul.f32 %v1120, %v890
    %1139 = vrot.lane.b32.xlu0 %v1136, 106
    %v1140 = vpop.permute.xlu0 %1139
    %v1142 = vmul.f32 %v1120, %v1140
    %1144 = vrot.lane.b32.xlu0 %v1142, 50
    %v1145 = vpop.permute.xlu0 %1144
    %v1147 = vadd.f32 %v1137, %v1145
    %v1148 = vtanh.pop %v1147
    %1150 = vrot.lane.b32.xlu0 %v1148, 50
    %v1151 = vpop.permute.xlu0 %1150
    %v1153 = vmul.f32 %v1120, %v1151
    %v1154 = vmul.f32 %v1135, %v1151
    %s1155 = scalar_lea.vmem %s0, 16
    %v1156 = vld [vmem:[%s1155] sm:$0xf]
    %1157 = vst [vmem:[#allocation1] ss:$4 sm:$0xff] %v995
    %v1158 = vld.sshfl [vmem:[#allocation1] sm:$0xff pattern:$0x73625140]
    %v1159 = vld.sshfl [vmem:[#allocation1 + $0x8] sm:$0xff pattern:$0x73625140]
    %1160 = vrot.lane.b32.xlu0 %v1158, 28
    %v1161 = vpop.permute.xlu0 %1160
    %1162 = vrot.lane.b32.xlu0 %v1159, 28
    %v1163 = vpop.permute.xlu0 %1162
    %v1164 = vsel %vm270, %v1161, %v1163
    %v1165 = vsel %vm119, %v1164, 0
    %1167 = vmatpush.msra.mxu0 0.0
    %1168 = vmatpush.msra.mxu0 0.0
    %1169 = vmatpush.msra.mxu0 0.0
    %1170 = vmatpush.msra.mxu0 0.0
    %1171 = vmatpush.msra.mxu0 0.0
    %1172 = vmatpush.msra.mxu0 0.0
    %1173 = vmatpush.msra.mxu0 0.0
    %1174 = vmatpush.msra.mxu0 0.0
    %1175 = vmatpush.msra.mxu0 0.0
    %1176 = vmatpush.msra.mxu0 %v125
    %1177 = vmatpush.msra.mxu0 %v85
    %1178 = vmatpush.msra.mxu0 %v83
    %1179 = vmatpush.msra.mxu0 %v81
    %1180 = vmatpush.msra.mxu0 %v79
    %1181 = vmatpush.msra.mxu0 %v77
    %1182 = vmatpush.msra.mxu0 %v75
    %1183 = vmatmul.f32.gmra.mxu0 %v1165
    %v1184 = vpop.f32.mrf.mxu0
    %v1185 = vadd.f32 0.0, %v1184
    %1186 = vdwg.mxu0
    %1187 = vmatpush.msra.mxu0 0.0
    %1188 = vmatpush.msra.mxu0 0.0
    %1189 = vmatpush.msra.mxu0 0.0
    %1190 = vmatpush.msra.mxu0 0.0
    %1191 = vmatpush.msra.mxu0 0.0
    %1192 = vmatpush.msra.mxu0 0.0
    %1193 = vmatpush.msra.mxu0 0.0
    %1194 = vmatpush.msra.mxu0 0.0
    %1195 = vmatpush.msra.mxu0 0.0
    %1196 = vmatpush.msra.mxu0 %v128
    %1197 = vmatpush.msra.mxu0 %v86
    %1198 = vmatpush.msra.mxu0 %v84
    %1199 = vmatpush.msra.mxu0 %v82
    %1200 = vmatpush.msra.mxu0 %v80
    %1201 = vmatpush.msra.mxu0 %v78
    %1202 = vmatpush.msra.mxu0 %v76
    %1203 = vmatmul.f32.gmra.mxu0 %v1165
    %v1204 = vpop.f32.mrf.mxu0
    %v1205 = vadd.f32 0.0, %v1204
    %1206 = vdwg.mxu0
    %v1209 = vrot.slane %v1205, 6
    %v1210 = vsel %vm123, %v1185, %v1209
    %v1212 = vadd.f32 %v1156, %v1210
    %v1213 = vxor.u32 %v1212, 2147483648
    %v1214 = vmul.f32 %v1213, 1.442695
    %v1215 = vpow.pop %v1214
    %v1216 = vadd.f32 %v1215, 1.0
    %v1217 = vrcp.pop %v1216
    %v1218 = vmul.f32 %v1216, %v1217
    %v1219 = vsub.f32 1.0, %v1218
    %v1220 = vmul.f32 %v1217, %v1219
    %v1221 = vadd.f32 %v1217, %v1220
    %vm1222 = vweird.f32 %v1216
    %vm1223 = vweird.f32 %v1217
    %vm1224 = vmor %vm1222, %vm1223
    %v1225 = vsel %vm1224, %v1217, %v1221
    %v1226 = vand.u32 2147483647, %v1216
    %vm1227 = vcmp.eq.f32.partialorder %v1226, 8.507059e+37
    %v1228 = vand.u32 %v1216, 2147483648
    %v1229 = vor.u32 1.1754944e-38, %v1228
    %v1230 = vsel %vm1227, %v1229, %v1225
    %v1231 = vmul.f32 1.0, %v1230
    %1233 = vrot.lane.b32.xlu0 %v1212, 106
    %v1234 = vpop.permute.xlu0 %1233
    %v1235 = vrot.slane %v1234, 2
    %v1237 = vtanh.pop %v1235
    %v1238 = vmul.f32 %v1231, %v987
    %v1239 = vmul.f32 %v1231, %v1237
    %1241 = vrot.lane.b32.xlu0 %v1239, 50
    %v1242 = vpop.permute.xlu0 %1241
    %v1244 = vadd.f32 %v1238, %v1242
    %v1245 = vtanh.pop %v1244
    %1247 = vrot.lane.b32.xlu0 %v1245, 50
    %v1248 = vpop.permute.xlu0 %1247
    %v1249 = vrot.slane %v1248, 6
    %v1250 = vsel %vm119, %v1249, %v1248
    %v1252 = vmul.f32 %v1231, %v1250
    %1255 = vrot.lane.b32.xlu0 %v1153, 28
    %v1256 = vpop.permute.xlu0 %1255
    %1257 = vrot.lane.b32.xlu0 %v1154, 28
    %v1258 = vpop.permute.xlu0 %1257
    %v1259 = vsel %vm270, %v1256, %v1258
    %v1260 = vsel %vm119, %v1259, 0
    %1262 = vmatpush.msra.mxu0 0.0
    %1263 = vmatpush.msra.mxu0 0.0
    %1264 = vmatpush.msra.mxu0 0.0
    %1265 = vmatpush.msra.mxu0 0.0
    %1266 = vmatpush.msra.mxu0 0.0
    %1267 = vmatpush.msra.mxu0 0.0
    %1268 = vmatpush.msra.mxu0 0.0
    %1269 = vmatpush.msra.mxu0 0.0
    %1270 = vmatpush.msra.mxu0 0.0
    %1271 = vmatpush.msra.mxu0 %v217
    %1272 = vmatpush.msra.mxu0 %v113
    %1273 = vmatpush.msra.mxu0 %v111
    %1274 = vmatpush.msra.mxu0 %v109
    %1275 = vmatpush.msra.mxu0 %v107
    %1276 = vmatpush.msra.mxu0 %v105
    %1277 = vmatpush.msra.mxu0 %v103
    %1278 = vmatmul.f32.gmra.mxu0 %v1260
    %v1279 = vpop.f32.mrf.mxu0
    %v1280 = vadd.f32 0.0, %v1279
    %1281 = vdwg.mxu0
    %1282 = vmatpush.msra.mxu0 0.0
    %1283 = vmatpush.msra.mxu0 0.0
    %1284 = vmatpush.msra.mxu0 0.0
    %1285 = vmatpush.msra.mxu0 0.0
    %1286 = vmatpush.msra.mxu0 0.0
    %1287 = vmatpush.msra.mxu0 0.0
    %1288 = vmatpush.msra.mxu0 0.0
    %1289 = vmatpush.msra.mxu0 0.0
    %1290 = vmatpush.msra.mxu0 0.0
    %1291 = vmatpush.msra.mxu0 %v220
    %1292 = vmatpush.msra.mxu0 %v114
    %1293 = vmatpush.msra.mxu0 %v112
    %1294 = vmatpush.msra.mxu0 %v110
    %1295 = vmatpush.msra.mxu0 %v108
    %1296 = vmatpush.msra.mxu0 %v106
    %1297 = vmatpush.msra.mxu0 %v104
    %1298 = vmatmul.f32.gmra.mxu0 %v1260
    %v1299 = vpop.f32.mrf.mxu0
    %v1300 = vadd.f32 0.0, %v1299
    %1301 = vdwg.mxu0
    %1303 = vst [vmem:[#allocation1] ss:$4 sm:$0xff] %v1252
    %v1304 = vld.sshfl [vmem:[#allocation1] sm:$0xff pattern:$0x73625140]
    %v1305 = vld.sshfl [vmem:[#allocation1 + $0x8] sm:$0xff pattern:$0x73625140]
    %1306 = vrot.lane.b32.xlu0 %v1304, 28
    %v1307 = vpop.permute.xlu0 %1306
    %1308 = vrot.lane.b32.xlu0 %v1305, 28
    %v1309 = vpop.permute.xlu0 %1308
    %v1310 = vsel %vm270, %v1307, %v1309
    %v1311 = vsel %vm119, %v1310, 0
    %1313 = vmatpush.msra.mxu0 0.0
    %1314 = vmatpush.msra.mxu0 0.0
    %1315 = vmatpush.msra.mxu0 0.0
    %1316 = vmatpush.msra.mxu0 0.0
    %1317 = vmatpush.msra.mxu0 0.0
    %1318 = vmatpush.msra.mxu0 0.0
    %1319 = vmatpush.msra.mxu0 0.0
    %1320 = vmatpush.msra.mxu0 0.0
    %1321 = vmatpush.msra.mxu0 0.0
    %1322 = vmatpush.msra.mxu0 %v275
    %1323 = vmatpush.msra.mxu0 %v99
    %1324 = vmatpush.msra.mxu0 %v97
    %1325 = vmatpush.msra.mxu0 %v95
    %1326 = vmatpush.msra.mxu0 %v93
    %1327 = vmatpush.msra.mxu0 %v91
    %1328 = vmatpush.msra.mxu0 %v89
    %1329 = vmatmul.f32.gmra.mxu0 %v1311
    %v1330 = vpop.f32.mrf.mxu0
    %v1331 = vadd.f32 %v1280, %v1330
    %1332 = vdwg.mxu0
    %1333 = vmatpush.msra.mxu0 0.0
    %1334 = vmatpush.msra.mxu0 0.0
    %1335 = vmatpush.msra.mxu0 0.0
    %1336 = vmatpush.msra.mxu0 0.0
    %1337 = vmatpush.msra.mxu0 0.0
    %1338 = vmatpush.msra.mxu0 0.0
    %1339 = vmatpush.msra.mxu0 0.0
    %1340 = vmatpush.msra.mxu0 0.0
    %1341 = vmatpush.msra.mxu0 0.0
    %1342 = vmatpush.msra.mxu0 %v278
    %1343 = vmatpush.msra.mxu0 %v100
    %1344 = vmatpush.msra.mxu0 %v98
    %1345 = vmatpush.msra.mxu0 %v96
    %1346 = vmatpush.msra.mxu0 %v94
    %1347 = vmatpush.msra.mxu0 %v92
    %1348 = vmatpush.msra.mxu0 %v90
    %1349 = vmatmul.f32.gmra.mxu0 %v1311
    %v1350 = vpop.f32.mrf.mxu0
    %v1351 = vadd.f32 %v1300, %v1350
    %1352 = vdwg.mxu0
    %v1353 = vadd.f32 %v1331, %v321
    %v1354 = vadd.f32 %v1351, %v322
    %v1355 = vxor.u32 %v1353, 2147483648
    %v1356 = vxor.u32 %v1354, 2147483648
    %v1357 = vmul.f32 %v1355, 1.442695
    %v1358 = vpow.pop %v1357
    %v1359 = vmul.f32 %v1356, 1.442695
    %v1360 = vpow.pop %v1359
    %v1361 = vadd.f32 %v1358, 1.0
    %v1362 = vadd.f32 %v1360, 1.0
    %v1363 = vrcp.pop %v1361
    %v1364 = vmul.f32 %v1361, %v1363
    %v1365 = vsub.f32 1.0, %v1364
    %v1366 = vmul.f32 %v1363, %v1365
    %v1367 = vadd.f32 %v1363, %v1366
    %vm1368 = vweird.f32 %v1361
    %vm1369 = vweird.f32 %v1363
    %vm1370 = vmor %vm1368, %vm1369
    %v1371 = vsel %vm1370, %v1363, %v1367
    %v1372 = vand.u32 2147483647, %v1361
    %vm1373 = vcmp.eq.f32.partialorder %v1372, 8.507059e+37
    %v1374 = vand.u32 %v1361, 2147483648
    %v1375 = vor.u32 1.1754944e-38, %v1374
    %v1376 = vsel %vm1373, %v1375, %v1371
    %v1377 = vmul.f32 1.0, %v1376
    %v1378 = vrcp.pop %v1362
    %v1379 = vmul.f32 %v1362, %v1378
    %v1380 = vsub.f32 1.0, %v1379
    %v1381 = vmul.f32 %v1378, %v1380
    %v1382 = vadd.f32 %v1378, %v1381
    %vm1383 = vweird.f32 %v1362
    %vm1384 = vweird.f32 %v1378
    %vm1385 = vmor %vm1383, %vm1384
    %v1386 = vsel %vm1385, %v1378, %v1382
    %v1387 = vand.u32 2147483647, %v1362
    %vm1388 = vcmp.eq.f32.partialorder %v1387, 8.507059e+37
    %v1389 = vand.u32 %v1362, 2147483648
    %v1390 = vor.u32 1.1754944e-38, %v1389
    %v1391 = vsel %vm1388, %v1390, %v1386
    %v1392 = vmul.f32 1.0, %v1391
    %v1393 = vtanh.pop %v1354
    %v1394 = vmul.f32 %v1377, %v1147
    %1396 = vrot.lane.b32.xlu0 %v1393, 106
    %v1397 = vpop.permute.xlu0 %1396
    %v1399 = vmul.f32 %v1377, %v1397
    %1401 = vrot.lane.b32.xlu0 %v1399, 50
    %v1402 = vpop.permute.xlu0 %1401
    %v1404 = vadd.f32 %v1394, %v1402
    %v1405 = vtanh.pop %v1404
    %1407 = vrot.lane.b32.xlu0 %v1405, 50
    %v1408 = vpop.permute.xlu0 %1407
    %v1410 = vmul.f32 %v1377, %v1408
    %v1411 = vmul.f32 %v1392, %v1408
    %s1412 = scalar_lea.vmem %s0, 20
    %v1413 = vld [vmem:[%s1412] sm:$0xf]
    %1414 = vst [vmem:[#allocation1] ss:$4 sm:$0xff] %v1252
    %v1415 = vld.sshfl [vmem:[#allocation1] sm:$0xff pattern:$0x73625140]
    %v1416 = vld.sshfl [vmem:[#allocation1 + $0x8] sm:$0xff pattern:$0x73625140]
    %1417 = vrot.lane.b32.xlu0 %v1415, 28
    %v1418 = vpop.permute.xlu0 %1417
    %1419 = vrot.lane.b32.xlu0 %v1416, 28
    %v1420 = vpop.permute.xlu0 %1419
    %v1421 = vsel %vm270, %v1418, %v1420
    %v1422 = vsel %vm119, %v1421, 0
    %1424 = vmatpush.msra.mxu0 0.0
    %1425 = vmatpush.msra.mxu0 0.0
    %1426 = vmatpush.msra.mxu0 0.0
    %1427 = vmatpush.msra.mxu0 0.0
    %1428 = vmatpush.msra.mxu0 0.0
    %1429 = vmatpush.msra.mxu0 0.0
    %1430 = vmatpush.msra.mxu0 0.0
    %1431 = vmatpush.msra.mxu0 0.0
    %1432 = vmatpush.msra.mxu0 0.0
    %1433 = vmatpush.msra.mxu0 %v125
    %1434 = vmatpush.msra.mxu0 %v85
    %1435 = vmatpush.msra.mxu0 %v83
    %1436 = vmatpush.msra.mxu0 %v81
    %1437 = vmatpush.msra.mxu0 %v79
    %1438 = vmatpush.msra.mxu0 %v77
    %1439 = vmatpush.msra.mxu0 %v75
    %1440 = vmatmul.f32.gmra.mxu0 %v1422
    %v1441 = vpop.f32.mrf.mxu0
    %v1442 = vadd.f32 0.0, %v1441
    %1443 = vdwg.mxu0
    %1444 = vmatpush.msra.mxu0 0.0
    %1445 = vmatpush.msra.mxu0 0.0
    %1446 = vmatpush.msra.mxu0 0.0
    %1447 = vmatpush.msra.mxu0 0.0
    %1448 = vmatpush.msra.mxu0 0.0
    %1449 = vmatpush.msra.mxu0 0.0
    %1450 = vmatpush.msra.mxu0 0.0
    %1451 = vmatpush.msra.mxu0 0.0
    %1452 = vmatpush.msra.mxu0 0.0
    %1453 = vmatpush.msra.mxu0 %v128
    %1454 = vmatpush.msra.mxu0 %v86
    %1455 = vmatpush.msra.mxu0 %v84
    %1456 = vmatpush.msra.mxu0 %v82
    %1457 = vmatpush.msra.mxu0 %v80
    %1458 = vmatpush.msra.mxu0 %v78
    %1459 = vmatpush.msra.mxu0 %v76
    %1460 = vmatmul.f32.gmra.mxu0 %v1422
    %v1461 = vpop.f32.mrf.mxu0
    %v1462 = vadd.f32 0.0, %v1461
    %1463 = vdwg.mxu0
    %v1466 = vrot.slane %v1462, 6
    %v1467 = vsel %vm123, %v1442, %v1466
    %v1469 = vadd.f32 %v1413, %v1467
    %v1470 = vxor.u32 %v1469, 2147483648
    %v1471 = vmul.f32 %v1470, 1.442695
    %v1472 = vpow.pop %v1471
    %v1473 = vadd.f32 %v1472, 1.0
    %v1474 = vrcp.pop %v1473
    %v1475 = vmul.f32 %v1473, %v1474
    %v1476 = vsub.f32 1.0, %v1475
    %v1477 = vmul.f32 %v1474, %v1476
    %v1478 = vadd.f32 %v1474, %v1477
    %vm1479 = vweird.f32 %v1473
    %vm1480 = vweird.f32 %v1474
    %vm1481 = vmor %vm1479, %vm1480
    %v1482 = vsel %vm1481, %v1474, %v1478
    %v1483 = vand.u32 2147483647, %v1473
    %vm1484 = vcmp.eq.f32.partialorder %v1483, 8.507059e+37
    %v1485 = vand.u32 %v1473, 2147483648
    %v1486 = vor.u32 1.1754944e-38, %v1485
    %v1487 = vsel %vm1484, %v1486, %v1482
    %v1488 = vmul.f32 1.0, %v1487
    %1490 = vrot.lane.b32.xlu0 %v1469, 106
    %v1491 = vpop.permute.xlu0 %1490
    %v1492 = vrot.slane %v1491, 2
    %v1494 = vtanh.pop %v1492
    %v1495 = vmul.f32 %v1488, %v1244
    %v1496 = vmul.f32 %v1488, %v1494
    %1498 = vrot.lane.b32.xlu0 %v1496, 50
    %v1499 = vpop.permute.xlu0 %1498
    %v1501 = vadd.f32 %v1495, %v1499
    %v1502 = vtanh.pop %v1501
    %1504 = vrot.lane.b32.xlu0 %v1502, 50
    %v1505 = vpop.permute.xlu0 %1504
    %v1506 = vrot.slane %v1505, 6
    %v1507 = vsel %vm119, %v1506, %v1505
    %v1509 = vmul.f32 %v1488, %v1507
    %1512 = vrot.lane.b32.xlu0 %v1410, 28
    %v1513 = vpop.permute.xlu0 %1512
    %1514 = vrot.lane.b32.xlu0 %v1411, 28
    %v1515 = vpop.permute.xlu0 %1514
    %v1516 = vsel %vm270, %v1513, %v1515
    %v1517 = vsel %vm119, %v1516, 0
    %1519 = vmatpush.msra.mxu0 0.0
    %1520 = vmatpush.msra.mxu0 0.0
    %1521 = vmatpush.msra.mxu0 0.0
    %1522 = vmatpush.msra.mxu0 0.0
    %1523 = vmatpush.msra.mxu0 0.0
    %1524 = vmatpush.msra.mxu0 0.0
    %1525 = vmatpush.msra.mxu0 0.0
    %1526 = vmatpush.msra.mxu0 0.0
    %1527 = vmatpush.msra.mxu0 0.0
    %1528 = vmatpush.msra.mxu0 %v217
    %1529 = vmatpush.msra.mxu0 %v113
    %1530 = vmatpush.msra.mxu0 %v111
    %1531 = vmatpush.msra.mxu0 %v109
    %1532 = vmatpush.msra.mxu0 %v107
    %1533 = vmatpush.msra.mxu0 %v105
    %1534 = vmatpush.msra.mxu0 %v103
    %1535 = vmatmul.f32.gmra.mxu0 %v1517
    %v1536 = vpop.f32.mrf.mxu0
    %v1537 = vadd.f32 0.0, %v1536
    %1538 = vdwg.mxu0
    %1539 = vmatpush.msra.mxu0 0.0
    %1540 = vmatpush.msra.mxu0 0.0
    %1541 = vmatpush.msra.mxu0 0.0
    %1542 = vmatpush.msra.mxu0 0.0
    %1543 = vmatpush.msra.mxu0 0.0
    %1544 = vmatpush.msra.mxu0 0.0
    %1545 = vmatpush.msra.mxu0 0.0
    %1546 = vmatpush.msra.mxu0 0.0
    %1547 = vmatpush.msra.mxu0 0.0
    %1548 = vmatpush.msra.mxu0 %v220
    %1549 = vmatpush.msra.mxu0 %v114
    %1550 = vmatpush.msra.mxu0 %v112
    %1551 = vmatpush.msra.mxu0 %v110
    %1552 = vmatpush.msra.mxu0 %v108
    %1553 = vmatpush.msra.mxu0 %v106
    %1554 = vmatpush.msra.mxu0 %v104
    %1555 = vmatmul.f32.gmra.mxu0 %v1517
    %v1556 = vpop.f32.mrf.mxu0
    %v1557 = vadd.f32 0.0, %v1556
    %1558 = vdwg.mxu0
    %1560 = vst [vmem:[#allocation1] ss:$4 sm:$0xff] %v1509
    %v1561 = vld.sshfl [vmem:[#allocation1] sm:$0xff pattern:$0x73625140]
    %v1562 = vld.sshfl [vmem:[#allocation1 + $0x8] sm:$0xff pattern:$0x73625140]
    %1563 = vrot.lane.b32.xlu0 %v1561, 28
    %v1564 = vpop.permute.xlu0 %1563
    %1565 = vrot.lane.b32.xlu0 %v1562, 28
    %v1566 = vpop.permute.xlu0 %1565
    %v1567 = vsel %vm270, %v1564, %v1566
    %v1568 = vsel %vm119, %v1567, 0
    %1570 = vmatpush.msra.mxu0 0.0
    %1571 = vmatpush.msra.mxu0 0.0
    %1572 = vmatpush.msra.mxu0 0.0
    %1573 = vmatpush.msra.mxu0 0.0
    %1574 = vmatpush.msra.mxu0 0.0
    %1575 = vmatpush.msra.mxu0 0.0
    %1576 = vmatpush.msra.mxu0 0.0
    %1577 = vmatpush.msra.mxu0 0.0
    %1578 = vmatpush.msra.mxu0 0.0
    %1579 = vmatpush.msra.mxu0 %v275
    %1580 = vmatpush.msra.mxu0 %v99
    %1581 = vmatpush.msra.mxu0 %v97
    %1582 = vmatpush.msra.mxu0 %v95
    %1583 = vmatpush.msra.mxu0 %v93
    %1584 = vmatpush.msra.mxu0 %v91
    %1585 = vmatpush.msra.mxu0 %v89
    %1586 = vmatmul.f32.gmra.mxu0 %v1568
    %v1587 = vpop.f32.mrf.mxu0
    %v1588 = vadd.f32 %v1537, %v1587
    %1589 = vdwg.mxu0
    %1590 = vmatpush.msra.mxu0 0.0
    %1591 = vmatpush.msra.mxu0 0.0
    %1592 = vmatpush.msra.mxu0 0.0
    %1593 = vmatpush.msra.mxu0 0.0
    %1594 = vmatpush.msra.mxu0 0.0
    %1595 = vmatpush.msra.mxu0 0.0
    %1596 = vmatpush.msra.mxu0 0.0
    %1597 = vmatpush.msra.mxu0 0.0
    %1598 = vmatpush.msra.mxu0 0.0
    %1599 = vmatpush.msra.mxu0 %v278
    %1600 = vmatpush.msra.mxu0 %v100
    %1601 = vmatpush.msra.mxu0 %v98
    %1602 = vmatpush.msra.mxu0 %v96
    %1603 = vmatpush.msra.mxu0 %v94
    %1604 = vmatpush.msra.mxu0 %v92
    %1605 = vmatpush.msra.mxu0 %v90
    %1606 = vmatmul.f32.gmra.mxu0 %v1568
    %v1607 = vpop.f32.mrf.mxu0
    %v1608 = vadd.f32 %v1557, %v1607
    %1609 = vdwg.mxu0
    %v1610 = vadd.f32 %v1588, %v321
    %v1611 = vadd.f32 %v1608, %v322
    %v1612 = vxor.u32 %v1610, 2147483648
    %v1613 = vxor.u32 %v1611, 2147483648
    %v1614 = vmul.f32 %v1612, 1.442695
    %v1615 = vpow.pop %v1614
    %v1616 = vmul.f32 %v1613, 1.442695
    %v1617 = vpow.pop %v1616
    %v1618 = vadd.f32 %v1615, 1.0
    %v1619 = vadd.f32 %v1617, 1.0
    %v1620 = vrcp.pop %v1618
    %v1621 = vmul.f32 %v1618, %v1620
    %v1622 = vsub.f32 1.0, %v1621
    %v1623 = vmul.f32 %v1620, %v1622
    %v1624 = vadd.f32 %v1620, %v1623
    %vm1625 = vweird.f32 %v1618
    %vm1626 = vweird.f32 %v1620
    %vm1627 = vmor %vm1625, %vm1626
    %v1628 = vsel %vm1627, %v1620, %v1624
    %v1629 = vand.u32 2147483647, %v1618
    %vm1630 = vcmp.eq.f32.partialorder %v1629, 8.507059e+37
    %v1631 = vand.u32 %v1618, 2147483648
    %v1632 = vor.u32 1.1754944e-38, %v1631
    %v1633 = vsel %vm1630, %v1632, %v1628
    %v1634 = vmul.f32 1.0, %v1633
    %v1635 = vrcp.pop %v1619
    %v1636 = vmul.f32 %v1619, %v1635
    %v1637 = vsub.f32 1.0, %v1636
    %v1638 = vmul.f32 %v1635, %v1637
    %v1639 = vadd.f32 %v1635, %v1638
    %vm1640 = vweird.f32 %v1619
    %vm1641 = vweird.f32 %v1635
    %vm1642 = vmor %vm1640, %vm1641
    %v1643 = vsel %vm1642, %v1635, %v1639
    %v1644 = vand.u32 2147483647, %v1619
    %vm1645 = vcmp.eq.f32.partialorder %v1644, 8.507059e+37
    %v1646 = vand.u32 %v1619, 2147483648
    %v1647 = vor.u32 1.1754944e-38, %v1646
    %v1648 = vsel %vm1645, %v1647, %v1643
    %v1649 = vmul.f32 1.0, %v1648
    %v1650 = vtanh.pop %v1611
    %v1651 = vmul.f32 %v1634, %v1404
    %1653 = vrot.lane.b32.xlu0 %v1650, 106
    %v1654 = vpop.permute.xlu0 %1653
    %v1656 = vmul.f32 %v1634, %v1654
    %1658 = vrot.lane.b32.xlu0 %v1656, 50
    %v1659 = vpop.permute.xlu0 %1658
    %v1661 = vadd.f32 %v1651, %v1659
    %v1662 = vtanh.pop %v1661
    %1664 = vrot.lane.b32.xlu0 %v1662, 50
    %v1665 = vpop.permute.xlu0 %1664
    %v1667 = vmul.f32 %v1634, %v1665
    %v1668 = vmul.f32 %v1649, %v1665
    %s1669 = scalar_lea.vmem %s0, 24
    %v1670 = vld [vmem:[%s1669] sm:$0xf]
    %1671 = vst [vmem:[#allocation1] ss:$4 sm:$0xff] %v1509
    %v1672 = vld.sshfl [vmem:[#allocation1] sm:$0xff pattern:$0x73625140]
    %v1673 = vld.sshfl [vmem:[#allocation1 + $0x8] sm:$0xff pattern:$0x73625140]
    %1674 = vrot.lane.b32.xlu0 %v1672, 28
    %v1675 = vpop.permute.xlu0 %1674
    %1676 = vrot.lane.b32.xlu0 %v1673, 28
    %v1677 = vpop.permute.xlu0 %1676
    %v1678 = vsel %vm270, %v1675, %v1677
    %v1679 = vsel %vm119, %v1678, 0
    %1681 = vmatpush.msra.mxu0 0.0
    %1682 = vmatpush.msra.mxu0 0.0
    %1683 = vmatpush.msra.mxu0 0.0
    %1684 = vmatpush.msra.mxu0 0.0
    %1685 = vmatpush.msra.mxu0 0.0
    %1686 = vmatpush.msra.mxu0 0.0
    %1687 = vmatpush.msra.mxu0 0.0
    %1688 = vmatpush.msra.mxu0 0.0
    %1689 = vmatpush.msra.mxu0 0.0
    %1690 = vmatpush.msra.mxu0 %v125
    %1691 = vmatpush.msra.mxu0 %v85
    %1692 = vmatpush.msra.mxu0 %v83
    %1693 = vmatpush.msra.mxu0 %v81
    %1694 = vmatpush.msra.mxu0 %v79
    %1695 = vmatpush.msra.mxu0 %v77
    %1696 = vmatpush.msra.mxu0 %v75
    %1697 = vmatmul.f32.gmra.mxu0 %v1679
    %v1698 = vpop.f32.mrf.mxu0
    %v1699 = vadd.f32 0.0, %v1698
    %1700 = vdwg.mxu0
    %1701 = vmatpush.msra.mxu0 0.0
    %1702 = vmatpush.msra.mxu0 0.0
    %1703 = vmatpush.msra.mxu0 0.0
    %1704 = vmatpush.msra.mxu0 0.0
    %1705 = vmatpush.msra.mxu0 0.0
    %1706 = vmatpush.msra.mxu0 0.0
    %1707 = vmatpush.msra.mxu0 0.0
    %1708 = vmatpush.msra.mxu0 0.0
    %1709 = vmatpush.msra.mxu0 0.0
    %1710 = vmatpush.msra.mxu0 %v128
    %1711 = vmatpush.msra.mxu0 %v86
    %1712 = vmatpush.msra.mxu0 %v84
    %1713 = vmatpush.msra.mxu0 %v82
    %1714 = vmatpush.msra.mxu0 %v80
    %1715 = vmatpush.msra.mxu0 %v78
    %1716 = vmatpush.msra.mxu0 %v76
    %1717 = vmatmul.f32.gmra.mxu0 %v1679
    %v1718 = vpop.f32.mrf.mxu0
    %v1719 = vadd.f32 0.0, %v1718
    %1720 = vdwg.mxu0
    %v1723 = vrot.slane %v1719, 6
    %v1724 = vsel %vm123, %v1699, %v1723
    %v1726 = vadd.f32 %v1670, %v1724
    %v1727 = vxor.u32 %v1726, 2147483648
    %v1728 = vmul.f32 %v1727, 1.442695
    %v1729 = vpow.pop %v1728
    %v1730 = vadd.f32 %v1729, 1.0
    %v1731 = vrcp.pop %v1730
    %v1732 = vmul.f32 %v1730, %v1731
    %v1733 = vsub.f32 1.0, %v1732
    %v1734 = vmul.f32 %v1731, %v1733
    %v1735 = vadd.f32 %v1731, %v1734
    %vm1736 = vweird.f32 %v1730
    %vm1737 = vweird.f32 %v1731
    %vm1738 = vmor %vm1736, %vm1737
    %v1739 = vsel %vm1738, %v1731, %v1735
    %v1740 = vand.u32 2147483647, %v1730
    %vm1741 = vcmp.eq.f32.partialorder %v1740, 8.507059e+37
    %v1742 = vand.u32 %v1730, 2147483648
    %v1743 = vor.u32 1.1754944e-38, %v1742
    %v1744 = vsel %vm1741, %v1743, %v1739
    %v1745 = vmul.f32 1.0, %v1744
    %1747 = vrot.lane.b32.xlu0 %v1726, 106
    %v1748 = vpop.permute.xlu0 %1747
    %v1749 = vrot.slane %v1748, 2
    %v1751 = vtanh.pop %v1749
    %v1752 = vmul.f32 %v1745, %v1501
    %v1753 = vmul.f32 %v1745, %v1751
    %1755 = vrot.lane.b32.xlu0 %v1753, 50
    %v1756 = vpop.permute.xlu0 %1755
    %v1758 = vadd.f32 %v1752, %v1756
    %v1759 = vtanh.pop %v1758
    %1761 = vrot.lane.b32.xlu0 %v1759, 50
    %v1762 = vpop.permute.xlu0 %1761
    %v1763 = vrot.slane %v1762, 6
    %v1764 = vsel %vm119, %v1763, %v1762
    %v1766 = vmul.f32 %v1745, %v1764
    %1769 = vrot.lane.b32.xlu0 %v1667, 28
    %v1770 = vpop.permute.xlu0 %1769
    %1771 = vrot.lane.b32.xlu0 %v1668, 28
    %v1772 = vpop.permute.xlu0 %1771
    %v1773 = vsel %vm270, %v1770, %v1772
    %v1774 = vsel %vm119, %v1773, 0
    %1776 = vmatpush.msra.mxu0 0.0
    %1777 = vmatpush.msra.mxu0 0.0
    %1778 = vmatpush.msra.mxu0 0.0
    %1779 = vmatpush.msra.mxu0 0.0
    %1780 = vmatpush.msra.mxu0 0.0
    %1781 = vmatpush.msra.mxu0 0.0
    %1782 = vmatpush.msra.mxu0 0.0
    %1783 = vmatpush.msra.mxu0 0.0
    %1784 = vmatpush.msra.mxu0 0.0
    %1785 = vmatpush.msra.mxu0 %v217
    %1786 = vmatpush.msra.mxu0 %v113
    %1787 = vmatpush.msra.mxu0 %v111
    %1788 = vmatpush.msra.mxu0 %v109
    %1789 = vmatpush.msra.mxu0 %v107
    %1790 = vmatpush.msra.mxu0 %v105
    %1791 = vmatpush.msra.mxu0 %v103
    %1792 = vmatmul.f32.gmra.mxu0 %v1774
    %v1793 = vpop.f32.mrf.mxu0
    %v1794 = vadd.f32 0.0, %v1793
    %1795 = vdwg.mxu0
    %1796 = vmatpush.msra.mxu0 0.0
    %1797 = vmatpush.msra.mxu0 0.0
    %1798 = vmatpush.msra.mxu0 0.0
    %1799 = vmatpush.msra.mxu0 0.0
    %1800 = vmatpush.msra.mxu0 0.0
    %1801 = vmatpush.msra.mxu0 0.0
    %1802 = vmatpush.msra.mxu0 0.0
    %1803 = vmatpush.msra.mxu0 0.0
    %1804 = vmatpush.msra.mxu0 0.0
    %1805 = vmatpush.msra.mxu0 %v220
    %1806 = vmatpush.msra.mxu0 %v114
    %1807 = vmatpush.msra.mxu0 %v112
    %1808 = vmatpush.msra.mxu0 %v110
    %1809 = vmatpush.msra.mxu0 %v108
    %1810 = vmatpush.msra.mxu0 %v106
    %1811 = vmatpush.msra.mxu0 %v104
    %1812 = vmatmul.f32.gmra.mxu0 %v1774
    %v1813 = vpop.f32.mrf.mxu0
    %v1814 = vadd.f32 0.0, %v1813
    %1815 = vdwg.mxu0
    %1817 = vst [vmem:[#allocation1] ss:$4 sm:$0xff] %v1766
    %v1818 = vld.sshfl [vmem:[#allocation1] sm:$0xff pattern:$0x73625140]
    %v1819 = vld.sshfl [vmem:[#allocation1 + $0x8] sm:$0xff pattern:$0x73625140]
    %1820 = vrot.lane.b32.xlu0 %v1818, 28
    %v1821 = vpop.permute.xlu0 %1820
    %1822 = vrot.lane.b32.xlu0 %v1819, 28
    %v1823 = vpop.permute.xlu0 %1822
    %v1824 = vsel %vm270, %v1821, %v1823
    %v1825 = vsel %vm119, %v1824, 0
    %1827 = vmatpush.msra.mxu0 0.0
    %1828 = vmatpush.msra.mxu0 0.0
    %1829 = vmatpush.msra.mxu0 0.0
    %1830 = vmatpush.msra.mxu0 0.0
    %1831 = vmatpush.msra.mxu0 0.0
    %1832 = vmatpush.msra.mxu0 0.0
    %1833 = vmatpush.msra.mxu0 0.0
    %1834 = vmatpush.msra.mxu0 0.0
    %1835 = vmatpush.msra.mxu0 0.0
    %1836 = vmatpush.msra.mxu0 %v275
    %1837 = vmatpush.msra.mxu0 %v99
    %1838 = vmatpush.msra.mxu0 %v97
    %1839 = vmatpush.msra.mxu0 %v95
    %1840 = vmatpush.msra.mxu0 %v93
    %1841 = vmatpush.msra.mxu0 %v91
    %1842 = vmatpush.msra.mxu0 %v89
    %1843 = vmatmul.f32.gmra.mxu0 %v1825
    %v1844 = vpop.f32.mrf.mxu0
    %v1845 = vadd.f32 %v1794, %v1844
    %1846 = vdwg.mxu0
    %1847 = vmatpush.msra.mxu0 0.0
    %1848 = vmatpush.msra.mxu0 0.0
    %1849 = vmatpush.msra.mxu0 0.0
    %1850 = vmatpush.msra.mxu0 0.0
    %1851 = vmatpush.msra.mxu0 0.0
    %1852 = vmatpush.msra.mxu0 0.0
    %1853 = vmatpush.msra.mxu0 0.0
    %1854 = vmatpush.msra.mxu0 0.0
    %1855 = vmatpush.msra.mxu0 0.0
    %1856 = vmatpush.msra.mxu0 %v278
    %1857 = vmatpush.msra.mxu0 %v100
    %1858 = vmatpush.msra.mxu0 %v98
    %1859 = vmatpush.msra.mxu0 %v96
    %1860 = vmatpush.msra.mxu0 %v94
    %1861 = vmatpush.msra.mxu0 %v92
    %1862 = vmatpush.msra.mxu0 %v90
    %1863 = vmatmul.f32.gmra.mxu0 %v1825
    %v1864 = vpop.f32.mrf.mxu0
    %v1865 = vadd.f32 %v1814, %v1864
    %1866 = vdwg.mxu0
    %v1867 = vadd.f32 %v1845, %v321
    %v1868 = vadd.f32 %v1865, %v322
    %v1869 = vxor.u32 %v1867, 2147483648
    %v1870 = vxor.u32 %v1868, 2147483648
    %v1871 = vmul.f32 %v1869, 1.442695
    %v1872 = vpow.pop %v1871
    %v1873 = vmul.f32 %v1870, 1.442695
    %v1874 = vpow.pop %v1873
    %v1875 = vadd.f32 %v1872, 1.0
    %v1876 = vadd.f32 %v1874, 1.0
    %v1877 = vrcp.pop %v1875
    %v1878 = vmul.f32 %v1875, %v1877
    %v1879 = vsub.f32 1.0, %v1878
    %v1880 = vmul.f32 %v1877, %v1879
    %v1881 = vadd.f32 %v1877, %v1880
    %vm1882 = vweird.f32 %v1875
    %vm1883 = vweird.f32 %v1877
    %vm1884 = vmor %vm1882, %vm1883
    %v1885 = vsel %vm1884, %v1877, %v1881
    %v1886 = vand.u32 2147483647, %v1875
    %vm1887 = vcmp.eq.f32.partialorder %v1886, 8.507059e+37
    %v1888 = vand.u32 %v1875, 2147483648
    %v1889 = vor.u32 1.1754944e-38, %v1888
    %v1890 = vsel %vm1887, %v1889, %v1885
    %v1891 = vmul.f32 1.0, %v1890
    %v1892 = vrcp.pop %v1876
    %v1893 = vmul.f32 %v1876, %v1892
    %v1894 = vsub.f32 1.0, %v1893
    %v1895 = vmul.f32 %v1892, %v1894
    %v1896 = vadd.f32 %v1892, %v1895
    %vm1897 = vweird.f32 %v1876
    %vm1898 = vweird.f32 %v1892
    %vm1899 = vmor %vm1897, %vm1898
    %v1900 = vsel %vm1899, %v1892, %v1896
    %v1901 = vand.u32 2147483647, %v1876
    %vm1902 = vcmp.eq.f32.partialorder %v1901, 8.507059e+37
    %v1903 = vand.u32 %v1876, 2147483648
    %v1904 = vor.u32 1.1754944e-38, %v1903
    %v1905 = vsel %vm1902, %v1904, %v1900
    %v1906 = vmul.f32 1.0, %v1905
    %v1907 = vtanh.pop %v1868
    %v1908 = vmul.f32 %v1891, %v1661
    %1910 = vrot.lane.b32.xlu0 %v1907, 106
    %v1911 = vpop.permute.xlu0 %1910
    %v1913 = vmul.f32 %v1891, %v1911
    %1915 = vrot.lane.b32.xlu0 %v1913, 50
    %v1916 = vpop.permute.xlu0 %1915
    %v1918 = vadd.f32 %v1908, %v1916
    %v1919 = vtanh.pop %v1918
    %1921 = vrot.lane.b32.xlu0 %v1919, 50
    %v1922 = vpop.permute.xlu0 %1921
    %v1924 = vmul.f32 %v1891, %v1922
    %v1925 = vmul.f32 %v1906, %v1922
    %s1926 = scalar_lea.vmem %s0, 28
    %v1927 = vld [vmem:[%s1926] sm:$0xf]
    %1928 = vst [vmem:[#allocation1] ss:$4 sm:$0xff] %v1766
    %v1929 = vld.sshfl [vmem:[#allocation1] sm:$0xff pattern:$0x73625140]
    %v1930 = vld.sshfl [vmem:[#allocation1 + $0x8] sm:$0xff pattern:$0x73625140]
    %1931 = vrot.lane.b32.xlu0 %v1929, 28
    %v1932 = vpop.permute.xlu0 %1931
    %1933 = vrot.lane.b32.xlu0 %v1930, 28
    %v1934 = vpop.permute.xlu0 %1933
    %v1935 = vsel %vm270, %v1932, %v1934
    %v1936 = vsel %vm119, %v1935, 0
    %1938 = vmatpush.msra.mxu0 0.0
    %1939 = vmatpush.msra.mxu0 0.0
    %1940 = vmatpush.msra.mxu0 0.0
    %1941 = vmatpush.msra.mxu0 0.0
    %1942 = vmatpush.msra.mxu0 0.0
    %1943 = vmatpush.msra.mxu0 0.0
    %1944 = vmatpush.msra.mxu0 0.0
    %1945 = vmatpush.msra.mxu0 0.0
    %1946 = vmatpush.msra.mxu0 0.0
    %1947 = vmatpush.msra.mxu0 %v125
    %1948 = vmatpush.msra.mxu0 %v85
    %1949 = vmatpush.msra.mxu0 %v83
    %1950 = vmatpush.msra.mxu0 %v81
    %1951 = vmatpush.msra.mxu0 %v79
    %1952 = vmatpush.msra.mxu0 %v77
    %1953 = vmatpush.msra.mxu0 %v75
    %1954 = vmatmul.f32.gmra.mxu0 %v1936
    %v1955 = vpop.f32.mrf.mxu0
    %v1956 = vadd.f32 0.0, %v1955
    %1957 = vdwg.mxu0
    %1958 = vmatpush.msra.mxu0 0.0
    %1959 = vmatpush.msra.mxu0 0.0
    %1960 = vmatpush.msra.mxu0 0.0
    %1961 = vmatpush.msra.mxu0 0.0
    %1962 = vmatpush.msra.mxu0 0.0
    %1963 = vmatpush.msra.mxu0 0.0
    %1964 = vmatpush.msra.mxu0 0.0
    %1965 = vmatpush.msra.mxu0 0.0
    %1966 = vmatpush.msra.mxu0 0.0
    %1967 = vmatpush.msra.mxu0 %v128
    %1968 = vmatpush.msra.mxu0 %v86
    %1969 = vmatpush.msra.mxu0 %v84
    %1970 = vmatpush.msra.mxu0 %v82
    %1971 = vmatpush.msra.mxu0 %v80
    %1972 = vmatpush.msra.mxu0 %v78
    %1973 = vmatpush.msra.mxu0 %v76
    %1974 = vmatmul.f32.gmra.mxu0 %v1936
    %v1975 = vpop.f32.mrf.mxu0
    %v1976 = vadd.f32 0.0, %v1975
    %1977 = vdwg.mxu0
    %v1980 = vrot.slane %v1976, 6
    %v1981 = vsel %vm123, %v1956, %v1980
    %v1983 = vadd.f32 %v1927, %v1981
    %v1984 = vxor.u32 %v1983, 2147483648
    %v1985 = vmul.f32 %v1984, 1.442695
    %v1986 = vpow.pop %v1985
    %v1987 = vadd.f32 %v1986, 1.0
    %v1988 = vrcp.pop %v1987
    %v1989 = vmul.f32 %v1987, %v1988
    %v1990 = vsub.f32 1.0, %v1989
    %v1991 = vmul.f32 %v1988, %v1990
    %v1992 = vadd.f32 %v1988, %v1991
    %vm1993 = vweird.f32 %v1987
    %vm1994 = vweird.f32 %v1988
    %vm1995 = vmor %vm1993, %vm1994
    %v1996 = vsel %vm1995, %v1988, %v1992
    %v1997 = vand.u32 2147483647, %v1987
    %vm1998 = vcmp.eq.f32.partialorder %v1997, 8.507059e+37
    %v1999 = vand.u32 %v1987, 2147483648
    %v2000 = vor.u32 1.1754944e-38, %v1999
    %v2001 = vsel %vm1998, %v2000, %v1996
    %v2002 = vmul.f32 1.0, %v2001
    %2004 = vrot.lane.b32.xlu0 %v1983, 106
    %v2005 = vpop.permute.xlu0 %2004
    %v2006 = vrot.slane %v2005, 2
    %v2008 = vtanh.pop %v2006
    %v2009 = vmul.f32 %v2002, %v1758
    %v2010 = vmul.f32 %v2002, %v2008
    %2012 = vrot.lane.b32.xlu0 %v2010, 50
    %v2013 = vpop.permute.xlu0 %2012
    %v2015 = vadd.f32 %v2009, %v2013
    %v2016 = vtanh.pop %v2015
    %2018 = vrot.lane.b32.xlu0 %v2016, 50
    %v2019 = vpop.permute.xlu0 %2018
    %v2020 = vrot.slane %v2019, 6
    %v2021 = vsel %vm119, %v2020, %v2019
    %v2023 = vmul.f32 %v2002, %v2021
    %2026 = vrot.lane.b32.xlu0 %v1924, 28
    %v2027 = vpop.permute.xlu0 %2026
    %2028 = vrot.lane.b32.xlu0 %v1925, 28
    %v2029 = vpop.permute.xlu0 %2028
    %v2030 = vsel %vm270, %v2027, %v2029
    %v2031 = vsel %vm119, %v2030, 0
    %2033 = vmatpush.msra.mxu0 0.0
    %2034 = vmatpush.msra.mxu0 0.0
    %2035 = vmatpush.msra.mxu0 0.0
    %2036 = vmatpush.msra.mxu0 0.0
    %2037 = vmatpush.msra.mxu0 0.0
    %2038 = vmatpush.msra.mxu0 0.0
    %2039 = vmatpush.msra.mxu0 0.0
    %2040 = vmatpush.msra.mxu0 0.0
    %2041 = vmatpush.msra.mxu0 0.0
    %2042 = vmatpush.msra.mxu0 %v217
    %2043 = vmatpush.msra.mxu0 %v113
    %2044 = vmatpush.msra.mxu0 %v111
    %2045 = vmatpush.msra.mxu0 %v109
    %2046 = vmatpush.msra.mxu0 %v107
    %2047 = vmatpush.msra.mxu0 %v105
    %2048 = vmatpush.msra.mxu0 %v103
    %2049 = vmatmul.f32.gmra.mxu0 %v2031
    %v2050 = vpop.f32.mrf.mxu0
    %v2051 = vadd.f32 0.0, %v2050
    %2052 = vdwg.mxu0
    %2053 = vmatpush.msra.mxu0 0.0
    %2054 = vmatpush.msra.mxu0 0.0
    %2055 = vmatpush.msra.mxu0 0.0
    %2056 = vmatpush.msra.mxu0 0.0
    %2057 = vmatpush.msra.mxu0 0.0
    %2058 = vmatpush.msra.mxu0 0.0
    %2059 = vmatpush.msra.mxu0 0.0
    %2060 = vmatpush.msra.mxu0 0.0
    %2061 = vmatpush.msra.mxu0 0.0
    %2062 = vmatpush.msra.mxu0 %v220
    %2063 = vmatpush.msra.mxu0 %v114
    %2064 = vmatpush.msra.mxu0 %v112
    %2065 = vmatpush.msra.mxu0 %v110
    %2066 = vmatpush.msra.mxu0 %v108
    %2067 = vmatpush.msra.mxu0 %v106
    %2068 = vmatpush.msra.mxu0 %v104
    %2069 = vmatmul.f32.gmra.mxu0 %v2031
    %v2070 = vpop.f32.mrf.mxu0
    %v2071 = vadd.f32 0.0, %v2070
    %2072 = vdwg.mxu0
    %2074 = vst [vmem:[#allocation1] ss:$4 sm:$0xff] %v2023
    %v2075 = vld.sshfl [vmem:[#allocation1] sm:$0xff pattern:$0x73625140]
    %v2076 = vld.sshfl [vmem:[#allocation1 + $0x8] sm:$0xff pattern:$0x73625140]
    %2077 = vrot.lane.b32.xlu0 %v2075, 28
    %v2078 = vpop.permute.xlu0 %2077
    %2079 = vrot.lane.b32.xlu0 %v2076, 28
    %v2080 = vpop.permute.xlu0 %2079
    %v2081 = vsel %vm270, %v2078, %v2080
    %v2082 = vsel %vm119, %v2081, 0
    %2084 = vmatpush.msra.mxu0 0.0
    %2085 = vmatpush.msra.mxu0 0.0
    %2086 = vmatpush.msra.mxu0 0.0
    %2087 = vmatpush.msra.mxu0 0.0
    %2088 = vmatpush.msra.mxu0 0.0
    %2089 = vmatpush.msra.mxu0 0.0
    %2090 = vmatpush.msra.mxu0 0.0
    %2091 = vmatpush.msra.mxu0 0.0
    %2092 = vmatpush.msra.mxu0 0.0
    %2093 = vmatpush.msra.mxu0 %v275
    %2094 = vmatpush.msra.mxu0 %v99
    %2095 = vmatpush.msra.mxu0 %v97
    %2096 = vmatpush.msra.mxu0 %v95
    %2097 = vmatpush.msra.mxu0 %v93
    %2098 = vmatpush.msra.mxu0 %v91
    %2099 = vmatpush.msra.mxu0 %v89
    %2100 = vmatmul.f32.gmra.mxu0 %v2082
    %v2101 = vpop.f32.mrf.mxu0
    %v2102 = vadd.f32 %v2051, %v2101
    %2103 = vdwg.mxu0
    %2104 = vmatpush.msra.mxu0 0.0
    %2105 = vmatpush.msra.mxu0 0.0
    %2106 = vmatpush.msra.mxu0 0.0
    %2107 = vmatpush.msra.mxu0 0.0
    %2108 = vmatpush.msra.mxu0 0.0
    %2109 = vmatpush.msra.mxu0 0.0
    %2110 = vmatpush.msra.mxu0 0.0
    %2111 = vmatpush.msra.mxu0 0.0
    %2112 = vmatpush.msra.mxu0 0.0
    %2113 = vmatpush.msra.mxu0 %v278
    %2114 = vmatpush.msra.mxu0 %v100
    %2115 = vmatpush.msra.mxu0 %v98
    %2116 = vmatpush.msra.mxu0 %v96
    %2117 = vmatpush.msra.mxu0 %v94
    %2118 = vmatpush.msra.mxu0 %v92
    %2119 = vmatpush.msra.mxu0 %v90
    %2120 = vmatmul.f32.gmra.mxu0 %v2082
    %v2121 = vpop.f32.mrf.mxu0
    %v2122 = vadd.f32 %v2071, %v2121
    %2123 = vdwg.mxu0
    %v2124 = vadd.f32 %v2102, %v321
    %v2125 = vadd.f32 %v2122, %v322
    %v2126 = vxor.u32 %v2124, 2147483648
    %v2127 = vxor.u32 %v2125, 2147483648
    %v2128 = vmul.f32 %v2126, 1.442695
    %v2129 = vpow.pop %v2128
    %v2130 = vmul.f32 %v2127, 1.442695
    %v2131 = vpow.pop %v2130
    %v2132 = vadd.f32 %v2129, 1.0
    %v2133 = vadd.f32 %v2131, 1.0
    %v2134 = vrcp.pop %v2132
    %v2135 = vmul.f32 %v2132, %v2134
    %v2136 = vsub.f32 1.0, %v2135
    %v2137 = vmul.f32 %v2134, %v2136
    %v2138 = vadd.f32 %v2134, %v2137
    %vm2139 = vweird.f32 %v2132
    %vm2140 = vweird.f32 %v2134
    %vm2141 = vmor %vm2139, %vm2140
    %v2142 = vsel %vm2141, %v2134, %v2138
    %v2143 = vand.u32 2147483647, %v2132
    %vm2144 = vcmp.eq.f32.partialorder %v2143, 8.507059e+37
    %v2145 = vand.u32 %v2132, 2147483648
    %v2146 = vor.u32 1.1754944e-38, %v2145
    %v2147 = vsel %vm2144, %v2146, %v2142
    %v2148 = vmul.f32 1.0, %v2147
    %v2149 = vrcp.pop %v2133
    %v2150 = vmul.f32 %v2133, %v2149
    %v2151 = vsub.f32 1.0, %v2150
    %v2152 = vmul.f32 %v2149, %v2151
    %v2153 = vadd.f32 %v2149, %v2152
    %vm2154 = vweird.f32 %v2133
    %vm2155 = vweird.f32 %v2149
    %vm2156 = vmor %vm2154, %vm2155
    %v2157 = vsel %vm2156, %v2149, %v2153
    %v2158 = vand.u32 2147483647, %v2133
    %vm2159 = vcmp.eq.f32.partialorder %v2158, 8.507059e+37
    %v2160 = vand.u32 %v2133, 2147483648
    %v2161 = vor.u32 1.1754944e-38, %v2160
    %v2162 = vsel %vm2159, %v2161, %v2157
    %v2163 = vmul.f32 1.0, %v2162
    %v2164 = vtanh.pop %v2125
    %v2165 = vmul.f32 %v2148, %v1918
    %2167 = vrot.lane.b32.xlu0 %v2164, 106
    %v2168 = vpop.permute.xlu0 %2167
    %v2170 = vmul.f32 %v2148, %v2168
    %2172 = vrot.lane.b32.xlu0 %v2170, 50
    %v2173 = vpop.permute.xlu0 %2172
    %v2175 = vadd.f32 %v2165, %v2173
    %v2176 = vtanh.pop %v2175
    %2178 = vrot.lane.b32.xlu0 %v2176, 50
    %v2179 = vpop.permute.xlu0 %2178
    %v2181 = vmul.f32 %v2148, %v2179
    %v2182 = vmul.f32 %v2163, %v2179
    %v2183 = vld [vmem:[%s5] sm:$0xff]
    %v2184 = vld [vmem:[%s5 + $0x8] sm:$0xff]
    %v2185 = vld [vmem:[%s5 + $0x10] sm:$0xff]
    %v2186 = vld [vmem:[%s5 + $0x18] sm:$0xff]
    %v2187 = vld [vmem:[%s5 + $0x20] sm:$0xff]
    %v2188 = vld [vmem:[%s5 + $0x28] sm:$0xff]
    %v2189 = vld [vmem:[%s5 + $0x30] sm:$0x3]
    %v2190 = vld [vmem:[#allocation2] sm:$0x1]
    %v2192 = vperm.slane %v2190, 0
    %2196 = vrot.lane.b32.xlu0 %v2181, 28
    %v2197 = vpop.permute.xlu0 %2196
    %2198 = vrot.lane.b32.xlu0 %v2182, 28
    %v2199 = vpop.permute.xlu0 %2198
    %v2200 = vsel %vm270, %v2197, %v2199
    %v2201 = vsel %vm119, %v2200, 0
    %v2204 = vsel %vm123, %v2189, 0
    %2206 = vmatpush.msra.mxu0 0.0
    %2207 = vmatpush.msra.mxu0 0.0
    %2208 = vmatpush.msra.mxu0 0.0
    %2209 = vmatpush.msra.mxu0 0.0
    %2210 = vmatpush.msra.mxu0 0.0
    %2211 = vmatpush.msra.mxu0 0.0
    %2212 = vmatpush.msra.mxu0 0.0
    %2213 = vmatpush.msra.mxu0 0.0
    %2214 = vmatpush.msra.mxu0 0.0
    %2215 = vmatpush.msra.mxu0 %v2204
    %2216 = vmatpush.msra.mxu0 %v2188
    %2217 = vmatpush.msra.mxu0 %v2187
    %2218 = vmatpush.msra.mxu0 %v2186
    %2219 = vmatpush.msra.mxu0 %v2185
    %2220 = vmatpush.msra.mxu0 %v2184
    %2221 = vmatpush.msra.mxu0 %v2183
    %2222 = vmatmul.f32.gmra.mxu0 %v2201
    %v2223 = vpop.f32.mrf.mxu0
    %v2224 = vadd.f32 %v2192, %v2223
    %2225 = vdwg.mxu0
    %vm2226 = vcmask 1024
    %2227 = vst.msk [vmem:[%s7] sm:$0x3] %vm2226, %v2224
    // Predicated region
    $region42: #{tpu_custom_call.1} parent=1 // pred_check
      _
    $region43: #{tpu_custom_call.1} parent=1 // pred_check_branch
      %2229 = sbr.rel (0) target = $region45
    $region44: #{tpu_custom_call.1} parent=1 // pred_region
      _
    $region45: #{tpu_custom_call.1} parent=1 // pred_fallthru
      _
    // Predicated region
    $region46: #{tpu_custom_call.1} parent=1 // pred_check
      _
    $region47: #{tpu_custom_call.1} parent=1 // pred_check_branch
      %2231 = sbr.rel (0) target = $region49
    $region48: #{tpu_custom_call.1} parent=1 // pred_region
      _
    $region49: #{tpu_custom_call.1} parent=1 // pred_fallthru
      _
    %2232 = vsyncpa [#allocation4], 1
    %2233 = vsyncpa [#allocation6], 1

</llo_original>
